<compile_context>
chip_gen: v5e
topology: v5e:2x2
jax: 0.10.0
libtpu: 0.0.40
codegen_flags: <defaults>
</compile_context>

<pallas_src>
import functools
import math

import jax
import jax.numpy as jnp
from jax.experimental import pallas as pl
from jax.experimental.pallas import tpu as pltpu


_NEG_INF = -1e30            # non-edge sentinel logit (bf16-representable; exp -> exactly 0)


# ----------------------------------------------------------------------------
# VMEM-aware sizing helpers
# ----------------------------------------------------------------------------

def _vmem_budget_bytes():
    """Scoped-VMEM budget derived from the actual chip (v5e/v6e: 128 MiB, v7x: 64 MiB)."""
    cap = 128 * 1024 * 1024
    try:
        cap = int(getattr(pltpu.get_tpu_info(), "vmem_capacity_bytes", cap)) or cap
    except Exception:                    # interpret mode / exotic backends
        pass
    if cap >= 96 * 1024 * 1024:
        return 96 * 1024 * 1024          # v5e / v6e: generous scoped limit, headroom left
    # v7x (64 MiB physical) -> ~40 MiB scoped limit
    return max(min(cap * 5 // 8, cap - 8 * 1024 * 1024), 16 * 1024 * 1024)


def _fit_tile(n, row_bytes, resident_bytes, budget, max_rows=2048):
    """Largest multiple-of-8 divisor of n that fits the VMEM budget and keeps grid >= 2
    (so v7x's two TensorCores both receive dst tiles)."""
    cap = max((budget - resident_bytes) // max(row_bytes, 1), 8)
    cap = min(cap, max_rows)
    best = None
    t = 8
    while t <= min(n, cap):
        if n % t == 0 and (2 * t <= n or n <= 8):
            best = t
        t += 8
    if best is None:
        best = n        # grid=1 fallback. TODO(synk): pad N/E to a multiple of 8 instead.
    return best


def _compiler_params(vmem_limit):
    return pltpu.CompilerParams(dimension_semantics=("parallel",),
                                vmem_limit_bytes=int(vmem_limit))


# ----------------------------------------------------------------------------
# Pallas kernels
# ----------------------------------------------------------------------------

def _node_proj_kernel(hcat_ref, w_ref, xl_ref):
    """xl = [h | onehot(batch)] @ [W_node ; P_ins]  (one bf16 MXU pass, f32 accumulate)."""
    xl_ref[...] = jnp.dot(hcat_ref[...], w_ref[...], preferred_element_type=jnp.float32)


def _gat_attend_kernel(lg_ref, xlh_ref, deg_ref, hres_ref, bias_ref,
                       bn_scale_ref, bn_shift_ref, out_ref, *,
                       heads, n_src, apply_bn_relu):
    """Per-dst-tile masked softmax + single fused aggregation matmul + fused epilogue.

    lg_ref:   (td, H*N) bf16   leaky_relu'd logits; -1e30 sentinel at non-edges
    xlh_ref:  (H*N, C)  bf16   heads-major source projections (row h*N + j = xl[j, h, :])
    deg_ref:  (td, 1)   f32    1.0 if the dst node has >= 1 incoming edge, else 0.0
    hres_ref: (td, C)   f32    residual input h
    bias/bn_* : (1, C)  f32
    """
    s = lg_ref[...].astype(jnp.float32)                          # (td, H*N)

    parts = []
    for hh in range(heads):                                      # per-head softmax over sources
        sh = s[:, hh * n_src:(hh + 1) * n_src]                   # (td, N) static lane slice
        m = jnp.max(sh, axis=1, keepdims=True)
        p = jnp.exp(sh - m)                                      # sentinel -> exp(-huge) = 0
        l = jnp.sum(p, axis=1, keepdims=True)                    # >= 1, never 0
        parts.append(p * pl.reciprocal(l, approx=True))          # EUP divide
    alpha = jnp.concatenate(parts, axis=1)                       # (td, H*N)

    # all heads folded into the contraction dim: ONE MXU matmul instead of H 32-wide ones
    acc = jnp.dot(alpha.astype(jnp.bfloat16), xlh_ref[...],
                  preferred_element_type=jnp.float32)            # (td, C)

    # epilogue: isolated-node zeroing, head mean, bias, residual, eval-BN, ReLU
    out = acc * (deg_ref[...] * (1.0 / heads)) + bias_ref[...] + hres_ref[...]
    if apply_bn_relu:
        out = jnp.maximum(out * bn_scale_ref[...] + bn_shift_ref[...], 0.0)
    out_ref[...] = out


def _node_projection(h_cat, w_stack, *, tn, vmem_limit):
    N, K = h_cat.shape
    HC = w_stack.shape[1]
    return pl.pallas_call(
        _node_proj_kernel,
        grid=(N // tn,),
        in_specs=[pl.BlockSpec((tn, K), lambda i: (i, 0)),
                  pl.BlockSpec((K, HC), lambda i: (0, 0))],
        out_specs=pl.BlockSpec((tn, HC), lambda i: (i, 0)),
        out_shape=jax.ShapeDtypeStruct((N, HC), jnp.float32),
        compiler_params=_compiler_params(vmem_limit),
    )(h_cat, w_stack)


def _gat_attend(logits, xl_hm, has_edge, h, bias, bn_scale, bn_shift, *,
                heads, out_ch, apply_bn_relu, td, vmem_limit):
    N, C = h.shape
    HN = logits.shape[1]                                         # heads * N
    kernel = functools.partial(_gat_attend_kernel, heads=heads, n_src=N,
                               apply_bn_relu=apply_bn_relu)
    return pl.pallas_call(
        kernel,
        grid=(N // td,),
        in_specs=[pl.BlockSpec((td, HN), lambda i: (i, 0)),      # streamed bf16 logits
                  pl.BlockSpec((HN, C), lambda i: (0, 0)),       # resident heads-major xl
                  pl.BlockSpec((td, 1), lambda i: (i, 0)),       # deg flag
                  pl.BlockSpec((td, C), lambda i: (i, 0)),       # residual h
                  pl.BlockSpec((1, C), lambda i: (0, 0)),        # bias
                  pl.BlockSpec((1, C), lambda i: (0, 0)),        # bn scale
                  pl.BlockSpec((1, C), lambda i: (0, 0))],       # bn shift
        out_specs=pl.BlockSpec((td, C), lambda i: (i, 0)),
        out_shape=jax.ShapeDtypeStruct((N, C), jnp.float32),
        compiler_params=_compiler_params(vmem_limit),
    )(logits, xl_hm, has_edge, h, bias, bn_scale, bn_shift)


# ----------------------------------------------------------------------------
# One GAT layer: Kernel A (projection) + O(E) glue + Kernel B (attention/aggregate)
# ----------------------------------------------------------------------------

def gat_conv_layer(conv_p, h, ins_edge_vec, guided_ins_vec, onehot_node,
                   edge_src, edge_dst, edge_batch, edge_attr, logits_prev, col_idx,
                   has_edge, bn_scale, bn_shift, *, apply_bn_relu, heads, out_ch,
                   tn, td, vmem_limit):
    N, C = h.shape
    Fe = edge_attr.shape[1]

    # --- Kernel A: node projection with stacked weight (one K=C+B bf16 matmul) -----
    w_l = conv_p['w_l']                                          # (C + ins_dim, H*C)
    p_ins = guided_ins_vec @ w_l[C:]                             # (B, H*C) per-graph term
    w_stack = jnp.concatenate([w_l[:C], p_ins], axis=0).astype(jnp.bfloat16)
    h_cat = jnp.concatenate([h, onehot_node], axis=1).astype(jnp.bfloat16)
    xl = _node_projection(h_cat, w_stack, tn=tn, vmem_limit=vmem_limit)   # (N, H*C) f32

    # --- O(N) + O(E) XLA glue: full per-edge attention logits ----------------------
    xl_heads = xl.reshape(N, heads, out_ch)
    al = jnp.einsum('nhc,hc->nh', xl_heads, conv_p['att_l'])     # (N, H) source coeff
    ar = jnp.einsum('nhc,hc->nh', xl_heads, conv_p['att_r'])     # (N, H) target coeff
    w_e_att = (conv_p['w_e'].reshape(-1, heads, out_ch) * conv_p['att_e'][None]).sum(-1)
    alpha_e = edge_attr @ w_e_att[:Fe] + (ins_edge_vec @ w_e_att[Fe:])[edge_batch]  # (E, H)
    logit_e = al[edge_src] + ar[edge_dst] + alpha_e
    logit_e = jnp.where(logit_e >= 0.0, logit_e, 0.2 * logit_e)  # leaky_relu(0.2) in glue
    # Re-scatter over the PERSISTENT bf16 sentinel tensor (edge positions are identical
    # every layer -> only E*H entries change).  Duplicate (src,dst) edges: last-write-wins.
    logits = logits_prev.at[edge_dst[:, None], col_idx].set(logit_e.astype(jnp.bfloat16))

    # heads-major source projections for the fused (td, H*N) @ (H*N, C) aggregation
    xl_hm = xl_heads.transpose(1, 0, 2).reshape(heads * N, out_ch).astype(jnp.bfloat16)

    # --- Kernel B: masked softmax + aggregation + fused epilogue -------------------
    out = _gat_attend(logits, xl_hm, has_edge, h, conv_p['bias'], bn_scale, bn_shift,
                      heads=heads, out_ch=out_ch, apply_bn_relu=apply_bn_relu,
                      td=td, vmem_limit=vmem_limit)
    return out, logits


# ----------------------------------------------------------------------------
# dga (transformer question encoder + coarse decoder) -- plain JAX glue
# ----------------------------------------------------------------------------

def _layer_norm(x, w, b, eps=1e-5):
    mu = jnp.mean(x, axis=-1, keepdims=True)
    var = jnp.mean((x - mu) ** 2, axis=-1, keepdims=True)
    return (x - mu) / jnp.sqrt(var + eps) * w + b


def _mha(q_in, k_in, v_in, p, nhead):
    d = q_in.shape[-1]
    hd = d // nhead
    wq, wk, wv = jnp.split(p['in_w'], 3, axis=0)
    bq, bk, bv = jnp.split(p['in_b'], 3, axis=0)
    q = q_in @ wq.T + bq
    k = k_in @ wk.T + bk
    v = v_in @ wv.T + bv
    Lq, B, _ = q.shape
    Lk = k.shape[0]

    def split_heads(t, L):
        return t.reshape(L, B, nhead, hd).transpose(1, 2, 0, 3)  # (B, nh, L, hd)

    qh, kh, vh = split_heads(q, Lq), split_heads(k, Lk), split_heads(v, Lk)
    scores = jnp.einsum('bhqd,bhkd->bhqk', qh, kh) / math.sqrt(hd)
    attn = jax.nn.softmax(scores, axis=-1)
    ctx = jnp.einsum('bhqk,bhkd->bhqd', attn, vh)
    ctx = ctx.transpose(2, 0, 1, 3).reshape(Lq, B, d)
    return ctx @ p['out_w'].T + p['out_b']


def _encoder_layer(x, p, nhead):
    x = _layer_norm(x + _mha(x, x, x, p['self_attn'], nhead), p['norm1_w'], p['norm1_b'])
    ff = jax.nn.relu(x @ p['lin1_w'].T + p['lin1_b']) @ p['lin2_w'].T + p['lin2_b']
    return _layer_norm(x + ff, p['norm2_w'], p['norm2_b'])


def _decoder_layer(t, mem, p, nhead):
    t = _layer_norm(t + _mha(t, t, t, p['self_attn'], nhead), p['norm1_w'], p['norm1_b'])
    t = _layer_norm(t + _mha(t, mem, mem, p['cross_attn'], nhead), p['norm2_w'], p['norm2_b'])
    ff = jax.nn.relu(t @ p['lin1_w'].T + p['lin1_b']) @ p['lin2_w'].T + p['lin2_b']
    return _layer_norm(t + ff, p['norm3_w'], p['norm3_b'])


def dga_forward(p, questions, *, nhead):
    """questions: (Lq, B) int32 -> guided instruction vectors (num_queries, B, d_model).

    NOTE: the reference's scene-graph/question word-matching loop only produces
    `use_flags`, whose list-truthiness (non-empty) is all gat_seq consumes -> always True,
    so it is skipped here."""
    d = p['emb_proj_w'].shape[0]
    src = p['text_emb'][questions]                               # (Lq, B, 300)
    src = (src @ p['emb_proj_w'].T + p['emb_proj_b']) * math.sqrt(d)
    src = src + p['pe'][:src.shape[0]]                           # positional encoding
    mem = src
    for lp in p['enc_layers']:
        mem = _encoder_layer(mem, lp, nhead)
    mem = _layer_norm(mem, p['enc_norm_w'], p['enc_norm_b'])

    B = questions.shape[1]
    tgt = jnp.repeat(p['query_embed'][:, None, :], B, axis=1)    # (Q, B, d)
    out = tgt
    for lp in p['dec_layers']:
        out = _decoder_layer(out, mem, lp, nhead)
    return _layer_norm(out, p['dec_norm_w'], p['dec_norm_b'])


# ----------------------------------------------------------------------------
# gat_seq forward (jitted at the call site)
# ----------------------------------------------------------------------------

def gat_seq_forward(params, x, edge_index, edge_attr, instr_vectors, batch, questions,
                    *, heads, out_ch, dga_nhead):
    N, C = x.shape
    B = questions.shape[1]
    HN = heads * N

    # dga output is identical for every layer in inference mode -> compute once.
    guided_ins = dga_forward(params['dga'], questions, nhead=dga_nhead)   # (Q, B, 128)

    # layer-invariant graph structure, computed once
    onehot_node = jax.nn.one_hot(batch, B, dtype=jnp.float32)             # (N, B)
    edge_src, edge_dst = edge_index[0], edge_index[1]
    edge_batch = batch[edge_src]
    col_idx = (jnp.arange(heads, dtype=jnp.int32) * N)[None, :] + edge_src[:, None]  # (E, H)
    has_edge = jnp.zeros((N, 1), jnp.float32).at[edge_dst, 0].set(1.0)

    # persistent dense logit buffer: -1e30 fill materialized once, re-scattered per layer
    logits = jnp.full((N, HN), _NEG_INF, jnp.bfloat16)

    # VMEM-aware tile sizes (static shapes + chip VMEM capacity)
    budget = _vmem_budget_bytes()
    row_b = 2 * (HN * 2 + 2 * C * 4 + 8)            # per-dst-row streamed bytes (x2 buffers)
    res_b = 2 * HN * out_ch * 2 + 4096              # resident heads-major xl (+ small consts)
    td = _fit_tile(N, row_b, res_b, budget)
    row_a = 2 * ((C + B) * 2 + heads * out_ch * 4)
    res_a = 2 * (C + B) * heads * out_ch * 2
    tn = _fit_tile(N, row_a, res_a, budget)

    ones_c = jnp.ones((1, C), jnp.float32)
    zeros_c = jnp.zeros((1, C), jnp.float32)

    h = x
    n_layers = len(params['convs'])
    for i in range(n_layers):
        last = (i == n_layers - 1)
        if not last:
            bn = params['bns'][i]                   # eval-mode BatchNorm1d folded to affine
            scale = bn['gamma'] / jnp.sqrt(bn['var'] + 1e-5)
            shift = bn['beta'] - bn['mean'] * scale
            bn_scale, bn_shift = scale.reshape(1, C), shift.reshape(1, C)
        else:
            bn_scale, bn_shift = ones_c, zeros_c
        h, logits = gat_conv_layer(
            params['convs'][i], h,
            instr_vectors[i],                       # edge instruction vector
            guided_ins[i],                          # node instruction (use_flags always truthy)
            onehot_node, edge_src, edge_dst, edge_batch, edge_attr,
            logits, col_idx, has_edge, bn_scale, bn_shift,
            apply_bn_relu=not last, heads=heads, out_ch=out_ch,
            tn=tn, td=td, vmem_limit=budget)
        # dropout(p=0.0) / eval mode -> no-op
    return h


# ----------------------------------------------------------------------------
# deterministic parameter construction
# ----------------------------------------------------------------------------

def _norm_init(key, shape, fan_in):
    return jax.random.normal(key, shape, jnp.float32) / math.sqrt(fan_in)


def _init_mha(key, d):
    k1, k2 = jax.random.split(key)
    return {'in_w': _norm_init(k1, (3 * d, d), d), 'in_b': jnp.zeros((3 * d,), jnp.float32),
            'out_w': _norm_init(k2, (d, d), d), 'out_b': jnp.zeros((d,), jnp.float32)}


def _init_enc_layer(key, d, nhid):
    ks = jax.random.split(key, 3)
    return {'self_attn': _init_mha(ks[0], d),
            'lin1_w': _norm_init(ks[1], (nhid, d), d), 'lin1_b': jnp.zeros((nhid,), jnp.float32),
            'lin2_w': _norm_init(ks[2], (d, nhid), nhid), 'lin2_b': jnp.zeros((d,), jnp.float32),
            'norm1_w': jnp.ones((d,), jnp.float32), 'norm1_b': jnp.zeros((d,), jnp.float32),
            'norm2_w': jnp.ones((d,), jnp.float32), 'norm2_b': jnp.zeros((d,), jnp.float32)}


def _init_dec_layer(key, d, nhid):
    ks = jax.random.split(key, 4)
    p = {'self_attn': _init_mha(ks[0], d), 'cross_attn': _init_mha(ks[1], d),
         'lin1_w': _norm_init(ks[2], (nhid, d), d), 'lin1_b': jnp.zeros((nhid,), jnp.float32),
         'lin2_w': _norm_init(ks[3], (d, nhid), nhid), 'lin2_b': jnp.zeros((d,), jnp.float32)}
    for n in ('norm1', 'norm2', 'norm3'):
        p[n + '_w'] = jnp.ones((d,), jnp.float32)
        p[n + '_b'] = jnp.zeros((d,), jnp.float32)
    return p


def _positional_encoding(max_len, d):
    position = jnp.arange(max_len, dtype=jnp.float32)[:, None]
    div_term = jnp.exp(jnp.arange(0, d, 2, dtype=jnp.float32) * (-math.log(10000.0) / d))
    pe = jnp.zeros((max_len, d), jnp.float32)
    pe = pe.at[:, 0::2].set(jnp.sin(position * div_term))
    pe = pe.at[:, 1::2].set(jnp.cos(position * div_term))
    return pe[:, None, :]                                        # (max_len, 1, d)


def _init_dga(key, cfg):
    d, nhid, nlayers = cfg['d_model'], cfg['nhid'], cfg['nlayers']
    ks = jax.random.split(key, 5)
    return {
        'text_emb': _norm_init(ks[0], (cfg['vocab'], cfg['text_emb_dim']), cfg['text_emb_dim']),
        'emb_proj_w': _norm_init(ks[1], (d, cfg['text_emb_dim']), cfg['text_emb_dim']),
        'emb_proj_b': jnp.zeros((d,), jnp.float32),
        'pe': _positional_encoding(cfg['max_len'], d),
        'enc_layers': [_init_enc_layer(k, d, nhid) for k in jax.random.split(ks[2], nlayers)],
        'enc_norm_w': jnp.ones((d,), jnp.float32), 'enc_norm_b': jnp.zeros((d,), jnp.float32),
        'query_embed': _norm_init(ks[3], (cfg['num_queries'], d), d),
        'dec_layers': [_init_dec_layer(k, d, nhid) for k in jax.random.split(ks[4], nlayers)],
        'dec_norm_w': jnp.ones((d,), jnp.float32), 'dec_norm_b': jnp.zeros((d,), jnp.float32),
    }


def _init_conv(key, f_in, f_edge, heads, out_ch):
    ks = jax.random.split(key, 5)
    return {'w_l': _norm_init(ks[0], (f_in, heads * out_ch), f_in),      # lin_l == lin_r
            'w_e': _norm_init(ks[1], (f_edge, heads * out_ch), f_edge),
            'att_l': _norm_init(ks[2], (heads, out_ch), out_ch),
            'att_r': _norm_init(ks[3], (heads, out_ch), out_ch),
            'att_e': _norm_init(ks[4], (heads, out_ch), out_ch),
            'bias': jnp.zeros((1, out_ch), jnp.float32)}                 # zeros() in reset


def init_gat_seq(key, cfg):
    num_ins = cfg['num_ins']
    ch, ins_dim = cfg['channels'], cfg['ins_dim']
    f_in = ch + ins_dim
    f_edge = cfg['edge_attr_dim'] + ins_dim
    kc, kd = jax.random.split(key)
    return {
        'convs': [_init_conv(k, f_in, f_edge, cfg['heads'], ch)
                  for k in jax.random.split(kc, num_ins)],
        'bns': [{'gamma': jnp.ones((ch,), jnp.float32), 'beta': jnp.zeros((ch,), jnp.float32),
                 'mean': jnp.zeros((ch,), jnp.float32), 'var': jnp.ones((ch,), jnp.float32)}
                for _ in range(num_ins - 1)],
        'dga': _init_dga(kd, cfg),
    }


# ----------------------------------------------------------------------------
if __name__ == "__main__":
    key = jax.random.PRNGKey(0)
    cfg = dict(channels=32, edge_attr_dim=16, ins_dim=128, num_ins=3, heads=4,
               vocab=50, text_emb_dim=300, d_model=128, nhead=8, nhid=512,
               nlayers=3, num_queries=3, max_len=64)

    B_graphs, nodes_per_graph = 2, 16
    N = B_graphs * nodes_per_graph                                # 32 nodes
    Lq = 6

    k_x, k_e, k_ins, k_q, k_p = jax.random.split(key, 5)
    x = jax.random.normal(k_x, (N, cfg['channels']), jnp.float32)
    edge_attr_base = jax.random.normal(k_e, (2 * N, cfg['edge_attr_dim']), jnp.float32)
    instr_vectors = jax.random.normal(k_ins, (cfg['num_ins'], B_graphs, cfg['ins_dim']),
                                      jnp.float32)
    questions = jax.random.randint(k_q, (Lq, B_graphs), 0, cfg['vocab'], jnp.int32)
    batch = jnp.repeat(jnp.arange(B_graphs, dtype=jnp.int32), nodes_per_graph)

    # Deterministic intra-graph edges (2 incoming per node, no duplicate (src, dst)).
    src_l, dst_l = [], []
    for g in range(B_graphs):
        base = g * nodes_per_graph
        for i in range(nodes_per_graph):
            for off in (1, 3):
                src_l.append(base + i)
                dst_l.append(base + (i + off) % nodes_per_graph)
    edge_index = jnp.array([src_l, dst_l], dtype=jnp.int32)       # (2, 64)
    edge_attr = edge_attr_base[:edge_index.shape[1]]              # (64, 16)

    params = init_gat_seq(k_p, cfg)

    forward = jax.jit(functools.partial(
        gat_seq_forward, heads=cfg['heads'], out_ch=cfg['channels'], dga_nhead=cfg['nhead']))
    out = forward(params, x, edge_index, edge_attr, instr_vectors, batch, questions)
    out = jax.block_until_ready(out)
    assert out.shape == (N, cfg['channels'])
    assert bool(jnp.all(jnp.isfinite(out)))
    print("KERNEL_OK")
</pallas_src>

<mosaic_0001>
module attributes {stable_mosaic.version = 11 : i64} {
  func.func @_node_proj_kernel(%arg0: i32, %arg1: memref<16x34xbf16, #tpu.memory_space<vmem>>, %arg2: memref<34x128xbf16, #tpu.memory_space<vmem>>, %arg3: memref<16x128xf32, #tpu.memory_space<vmem>>) attributes {dimension_semantics = [#tpu.dimension_semantics<parallel>], iteration_bounds = array<i64: 2>, scalar_prefetch = 0 : i64, scratch_operands = 0 : i64, tpu.core_type = #tpu.core_type<tc>, window_params = [{transform_indices = @transform_0, window_bounds = array<i64: 16, 34>}, {pipeline_mode = #tpu.pipeline_mode<synchronous>, transform_indices = @transform_1, window_bounds = array<i64: 34, 128>}, {transform_indices = @transform_2, window_bounds = array<i64: 16, 128>}]} {
    %c0 = arith.constant 0 : index
    %c0_0 = arith.constant 0 : index
    %0 = vector.load %arg1[%c0, %c0_0] : memref<16x34xbf16, #tpu.memory_space<vmem>>, vector<16x34xbf16>
    %c0_1 = arith.constant 0 : index
    %c0_2 = arith.constant 0 : index
    %1 = vector.load %arg2[%c0_1, %c0_2] : memref<34x128xbf16, #tpu.memory_space<vmem>>, vector<34x128xbf16>
    %cst = arith.constant dense<0.000000e+00> : vector<16x128xf32>
    %2 = tpu.matmul %0, %1, %cst {dimension_numbers = #tpu.dot_dimension_numbers<[1], [0], [0], [1], [0, 0, 1, 1], [], []>} : vector<16x34xbf16>, vector<34x128xbf16>, vector<16x128xf32> -> vector<16x128xf32>
    %c0_3 = arith.constant 0 : index
    %c0_4 = arith.constant 0 : index
    %3 = vector.load %arg3[%c0_3, %c0_4] : memref<16x128xf32, #tpu.memory_space<vmem>>, vector<16x128xf32>
    tpu.vector_store %arg3[%c0_3, %c0_4], %2 {strides = array<i32>} : memref<16x128xf32, #tpu.memory_space<vmem>>, vector<16x128xf32>,
    return
  }
  func.func @transform_0(%arg0: i32) -> (i32, i32) {
    %c0_i32 = arith.constant 0 : i32
    %c0_i32_0 = arith.constant 0 : i32
    return %arg0, %c0_i32 : i32, i32
  }
  func.func @transform_1(%arg0: i32) -> (i32, i32) {
    %c0_i32 = arith.constant 0 : i32
    %c0_i32_0 = arith.constant 0 : i32
    %c0_i32_1 = arith.constant 0 : i32
    return %c0_i32, %c0_i32_0 : i32, i32
  }
  func.func @transform_2(%arg0: i32) -> (i32, i32) {
    %c0_i32 = arith.constant 0 : i32
    %c0_i32_0 = arith.constant 0 : i32
    return %arg0, %c0_i32 : i32, i32
  }
}

module attributes {stable_mosaic.version = 11 : i64} {
  func.func @_gat_attend_kernel(%arg0: i32, %arg1: memref<16x128xbf16, #tpu.memory_space<vmem>>, %arg2: memref<128x32xbf16, #tpu.memory_space<vmem>>, %arg3: memref<16x1xf32, #tpu.memory_space<vmem>>, %arg4: memref<16x32xf32, #tpu.memory_space<vmem>>, %arg5: memref<1x32xf32, #tpu.memory_space<vmem>>, %arg6: memref<1x32xf32, #tpu.memory_space<vmem>>, %arg7: memref<1x32xf32, #tpu.memory_space<vmem>>, %arg8: memref<16x32xf32, #tpu.memory_space<vmem>>) attributes {dimension_semantics = [#tpu.dimension_semantics<parallel>], iteration_bounds = array<i64: 2>, scalar_prefetch = 0 : i64, scratch_operands = 0 : i64, tpu.core_type = #tpu.core_type<tc>, window_params = [{transform_indices = @transform_0, window_bounds = array<i64: 16, 128>}, {pipeline_mode = #tpu.pipeline_mode<synchronous>, transform_indices = @transform_1, window_bounds = array<i64: 128, 32>}, {transform_indices = @transform_2, window_bounds = array<i64: 16, 1>}, {transform_indices = @transform_3, window_bounds = array<i64: 16, 32>}, {pipeline_mode = #tpu.pipeline_mode<synchronous>, transform_indices = @transform_4, window_bounds = array<i64: 1, 32>}, {pipeline_mode = #tpu.pipeline_mode<synchronous>, transform_indices = @transform_5, window_bounds = array<i64: 1, 32>}, {pipeline_mode = #tpu.pipeline_mode<synchronous>, transform_indices = @transform_6, window_bounds = array<i64: 1, 32>}, {transform_indices = @transform_7, window_bounds = array<i64: 16, 32>}]} {
    %c0 = arith.constant 0 : index
    %c0_0 = arith.constant 0 : index
    %0 = vector.load %arg1[%c0, %c0_0] : memref<16x128xbf16, #tpu.memory_space<vmem>>, vector<16x128xbf16>
    %1 = arith.extf %0 : vector<16x128xbf16> to vector<16x128xf32>
    %2 = vector.extract_strided_slice %1 {offsets = [0, 0], sizes = [16, 32], strides = [1, 1]} : vector<16x128xf32> to vector<16x32xf32>
    %cst = arith.constant dense<0xFF800000> : vector<16xf32>
    %3 = vector.multi_reduction <maximumf>, %2, %cst [1] : vector<16x32xf32> to vector<16xf32>
    %4 = vector.shape_cast %3 : vector<16xf32> to vector<16x1xf32>
    %5 = vector.broadcast %4 : vector<16x1xf32> to vector<16x32xf32>
    %6 = arith.subf %2, %5 : vector<16x32xf32>
    %7 = math.exp %6 : vector<16x32xf32>
    %cst_1 = arith.constant dense<0.000000e+00> : vector<16xf32>
    %8 = vector.multi_reduction <add>, %7, %cst_1 [1] : vector<16x32xf32> to vector<16xf32>
    %9 = vector.shape_cast %8 : vector<16xf32> to vector<16x1xf32>
    %10 = tpu.reciprocal %9 {approx = true} : vector<16x1xf32> -> vector<16x1xf32>
    %11 = vector.broadcast %10 : vector<16x1xf32> to vector<16x32xf32>
    %12 = arith.mulf %7, %11 : vector<16x32xf32>
    %13 = vector.extract_strided_slice %1 {offsets = [0, 32], sizes = [16, 32], strides = [1, 1]} : vector<16x128xf32> to vector<16x32xf32>
    %cst_2 = arith.constant dense<0xFF800000> : vector<16xf32>
    %14 = vector.multi_reduction <maximumf>, %13, %cst_2 [1] : vector<16x32xf32> to vector<16xf32>
    %15 = vector.shape_cast %14 : vector<16xf32> to vector<16x1xf32>
    %16 = vector.broadcast %15 : vector<16x1xf32> to vector<16x32xf32>
    %17 = arith.subf %13, %16 : vector<16x32xf32>
    %18 = math.exp %17 : vector<16x32xf32>
    %cst_3 = arith.constant dense<0.000000e+00> : vector<16xf32>
    %19 = vector.multi_reduction <add>, %18, %cst_3 [1] : vector<16x32xf32> to vector<16xf32>
    %20 = vector.shape_cast %19 : vector<16xf32> to vector<16x1xf32>
    %21 = tpu.reciprocal %20 {approx = true} : vector<16x1xf32> -> vector<16x1xf32>
    %22 = vector.broadcast %21 : vector<16x1xf32> to vector<16x32xf32>
    %23 = arith.mulf %18, %22 : vector<16x32xf32>
    %24 = vector.extract_strided_slice %1 {offsets = [0, 64], sizes = [16, 32], strides = [1, 1]} : vector<16x128xf32> to vector<16x32xf32>
    %cst_4 = arith.constant dense<0xFF800000> : vector<16xf32>
    %25 = vector.multi_reduction <maximumf>, %24, %cst_4 [1] : vector<16x32xf32> to vector<16xf32>
    %26 = vector.shape_cast %25 : vector<16xf32> to vector<16x1xf32>
    %27 = vector.broadcast %26 : vector<16x1xf32> to vector<16x32xf32>
    %28 = arith.subf %24, %27 : vector<16x32xf32>
    %29 = math.exp %28 : vector<16x32xf32>
    %cst_5 = arith.constant dense<0.000000e+00> : vector<16xf32>
    %30 = vector.multi_reduction <add>, %29, %cst_5 [1] : vector<16x32xf32> to vector<16xf32>
    %31 = vector.shape_cast %30 : vector<16xf32> to vector<16x1xf32>
    %32 = tpu.reciprocal %31 {approx = true} : vector<16x1xf32> -> vector<16x1xf32>
    %33 = vector.broadcast %32 : vector<16x1xf32> to vector<16x32xf32>
    %34 = arith.mulf %29, %33 : vector<16x32xf32>
    %35 = vector.extract_strided_slice %1 {offsets = [0, 96], sizes = [16, 32], strides = [1, 1]} : vector<16x128xf32> to vector<16x32xf32>
    %cst_6 = arith.constant dense<0xFF800000> : vector<16xf32>
    %36 = vector.multi_reduction <maximumf>, %35, %cst_6 [1] : vector<16x32xf32> to vector<16xf32>
    %37 = vector.shape_cast %36 : vector<16xf32> to vector<16x1xf32>
    %38 = vector.broadcast %37 : vector<16x1xf32> to vector<16x32xf32>
    %39 = arith.subf %35, %38 : vector<16x32xf32>
    %40 = math.exp %39 : vector<16x32xf32>
    %cst_7 = arith.constant dense<0.000000e+00> : vector<16xf32>
    %41 = vector.multi_reduction <add>, %40, %cst_7 [1] : vector<16x32xf32> to vector<16xf32>
    %42 = vector.shape_cast %41 : vector<16xf32> to vector<16x1xf32>
    %43 = tpu.reciprocal %42 {approx = true} : vector<16x1xf32> -> vector<16x1xf32>
    %44 = vector.broadcast %43 : vector<16x1xf32> to vector<16x32xf32>
    %45 = arith.mulf %40, %44 : vector<16x32xf32>
    %46 = tpu.concatenate %12, %23, %34, %45 in 1 : vector<16x32xf32>, vector<16x32xf32>, vector<16x32xf32>, vector<16x32xf32> -> vector<16x128xf32>
    %47 = arith.truncf %46 : vector<16x128xf32> to vector<16x128xbf16>
    %c0_8 = arith.constant 0 : index
    %c0_9 = arith.constant 0 : index
    %48 = vector.load %arg2[%c0_8, %c0_9] : memref<128x32xbf16, #tpu.memory_space<vmem>>, vector<128x32xbf16>
    %cst_10 = arith.constant dense<0.000000e+00> : vector<16x32xf32>
    %49 = tpu.matmul %47, %48, %cst_10 {dimension_numbers = #tpu.dot_dimension_numbers<[1], [0], [0], [1], [0, 0, 1, 1], [], []>} : vector<16x128xbf16>, vector<128x32xbf16>, vector<16x32xf32> -> vector<16x32xf32>
    %c0_11 = arith.constant 0 : index
    %c0_12 = arith.constant 0 : index
    %50 = vector.load %arg3[%c0_11, %c0_12] : memref<16x1xf32, #tpu.memory_space<vmem>>, vector<16x1xf32>
    %cst_13 = arith.constant 2.500000e-01 : f32
    %51 = vector.broadcast %cst_13 : f32 to vector<16x1xf32>
    %52 = arith.mulf %50, %51 : vector<16x1xf32>
    %53 = vector.broadcast %52 : vector<16x1xf32> to vector<16x32xf32>
    %54 = arith.mulf %49, %53 : vector<16x32xf32>
    %c0_14 = arith.constant 0 : index
    %c0_15 = arith.constant 0 : index
    %55 = vector.load %arg5[%c0_14, %c0_15] : memref<1x32xf32, #tpu.memory_space<vmem>>, vector<1x32xf32>
    %56 = vector.broadcast %55 : vector<1x32xf32> to vector<16x32xf32>
    %57 = arith.addf %54, %56 : vector<16x32xf32>
    %c0_16 = arith.constant 0 : index
    %c0_17 = arith.constant 0 : index
    %58 = vector.load %arg4[%c0_16, %c0_17] : memref<16x32xf32, #tpu.memory_space<vmem>>, vector<16x32xf32>
    %59 = arith.addf %57, %58 : vector<16x32xf32>
    %c0_18 = arith.constant 0 : index
    %c0_19 = arith.constant 0 : index
    %60 = vector.load %arg6[%c0_18, %c0_19] : memref<1x32xf32, #tpu.memory_space<vmem>>, vector<1x32xf32>
    %61 = vector.broadcast %60 : vector<1x32xf32> to vector<16x32xf32>
    %62 = arith.mulf %59, %61 : vector<16x32xf32>
    %c0_20 = arith.constant 0 : index
    %c0_21 = arith.constant 0 : index
    %63 = vector.load %arg7[%c0_20, %c0_21] : memref<1x32xf32, #tpu.memory_space<vmem>>, vector<1x32xf32>
    %64 = vector.broadcast %63 : vector<1x32xf32> to vector<16x32xf32>
    %65 = arith.addf %62, %64 : vector<16x32xf32>
    %cst_22 = arith.constant 0.000000e+00 : f32
    %66 = vector.broadcast %cst_22 : f32 to vector<16x32xf32>
    %67 = arith.maximumf %65, %66 : vector<16x32xf32>
    %c0_23 = arith.constant 0 : index
    %c0_24 = arith.constant 0 : index
    %68 = vector.load %arg8[%c0_23, %c0_24] : memref<16x32xf32, #tpu.memory_space<vmem>>, vector<16x32xf32>
    tpu.vector_store %arg8[%c0_23, %c0_24], %67 {strides = array<i32>} : memref<16x32xf32, #tpu.memory_space<vmem>>, vector<16x32xf32>,
    return
  }
  func.func @transform_0(%arg0: i32) -> (i32, i32) {
    %c0_i32 = arith.constant 0 : i32
    %c0_i32_0 = arith.constant 0 : i32
    return %arg0, %c0_i32 : i32, i32
  }
  func.func @transform_1(%arg0: i32) -> (i32, i32) {
    %c0_i32 = arith.constant 0 : i32
    %c0_i32_0 = arith.constant 0 : i32
    %c0_i32_1 = arith.constant 0 : i32
    return %c0_i32, %c0_i32_0 : i32, i32
  }
  func.func @transform_2(%arg0: i32) -> (i32, i32) {
    %c0_i32 = arith.constant 0 : i32
    %c0_i32_0 = arith.constant 0 : i32
    return %arg0, %c0_i32 : i32, i32
  }
  func.func @transform_3(%arg0: i32) -> (i32, i32) {
    %c0_i32 = arith.constant 0 : i32
    %c0_i32_0 = arith.constant 0 : i32
    return %arg0, %c0_i32 : i32, i32
  }
  func.func @transform_4(%arg0: i32) -> (i32, i32) {
    %c0_i32 = arith.constant 0 : i32
    %c0_i32_0 = arith.constant 0 : i32
    %c0_i32_1 = arith.constant 0 : i32
    return %c0_i32, %c0_i32_0 : i32, i32
  }
  func.func @transform_5(%arg0: i32) -> (i32, i32) {
    %c0_i32 = arith.constant 0 : i32
    %c0_i32_0 = arith.constant 0 : i32
    %c0_i32_1 = arith.constant 0 : i32
    return %c0_i32, %c0_i32_0 : i32, i32
  }
  func.func @transform_6(%arg0: i32) -> (i32, i32) {
    %c0_i32 = arith.constant 0 : i32
    %c0_i32_0 = arith.constant 0 : i32
    %c0_i32_1 = arith.constant 0 : i32
    return %c0_i32, %c0_i32_0 : i32, i32
  }
  func.func @transform_7(%arg0: i32) -> (i32, i32) {
    %c0_i32 = arith.constant 0 : i32
    %c0_i32_0 = arith.constant 0 : i32
    return %arg0, %c0_i32 : i32, i32
  }
}

module attributes {stable_mosaic.version = 11 : i64} {
  func.func @_gat_attend_kernel(%arg0: i32, %arg1: memref<16x128xbf16, #tpu.memory_space<vmem>>, %arg2: memref<128x32xbf16, #tpu.memory_space<vmem>>, %arg3: memref<16x1xf32, #tpu.memory_space<vmem>>, %arg4: memref<16x32xf32, #tpu.memory_space<vmem>>, %arg5: memref<1x32xf32, #tpu.memory_space<vmem>>, %arg6: memref<1x32xf32, #tpu.memory_space<vmem>>, %arg7: memref<1x32xf32, #tpu.memory_space<vmem>>, %arg8: memref<16x32xf32, #tpu.memory_space<vmem>>) attributes {dimension_semantics = [#tpu.dimension_semantics<parallel>], iteration_bounds = array<i64: 2>, scalar_prefetch = 0 : i64, scratch_operands = 0 : i64, tpu.core_type = #tpu.core_type<tc>, window_params = [{transform_indices = @transform_0, window_bounds = array<i64: 16, 128>}, {pipeline_mode = #tpu.pipeline_mode<synchronous>, transform_indices = @transform_1, window_bounds = array<i64: 128, 32>}, {transform_indices = @transform_2, window_bounds = array<i64: 16, 1>}, {transform_indices = @transform_3, window_bounds = array<i64: 16, 32>}, {pipeline_mode = #tpu.pipeline_mode<synchronous>, transform_indices = @transform_4, window_bounds = array<i64: 1, 32>}, {pipeline_mode = #tpu.pipeline_mode<synchronous>, transform_indices = @transform_5, window_bounds = array<i64: 1, 32>}, {pipeline_mode = #tpu.pipeline_mode<synchronous>, transform_indices = @transform_6, window_bounds = array<i64: 1, 32>}, {transform_indices = @transform_7, window_bounds = array<i64: 16, 32>}]} {
    %c0 = arith.constant 0 : index
    %c0_0 = arith.constant 0 : index
    %0 = vector.load %arg1[%c0, %c0_0] : memref<16x128xbf16, #tpu.memory_space<vmem>>, vector<16x128xbf16>
    %1 = arith.extf %0 : vector<16x128xbf16> to vector<16x128xf32>
    %2 = vector.extract_strided_slice %1 {offsets = [0, 0], sizes = [16, 32], strides = [1, 1]} : vector<16x128xf32> to vector<16x32xf32>
    %cst = arith.constant dense<0xFF800000> : vector<16xf32>
    %3 = vector.multi_reduction <maximumf>, %2, %cst [1] : vector<16x32xf32> to vector<16xf32>
    %4 = vector.shape_cast %3 : vector<16xf32> to vector<16x1xf32>
    %5 = vector.broadcast %4 : vector<16x1xf32> to vector<16x32xf32>
    %6 = arith.subf %2, %5 : vector<16x32xf32>
    %7 = math.exp %6 : vector<16x32xf32>
    %cst_1 = arith.constant dense<0.000000e+00> : vector<16xf32>
    %8 = vector.multi_reduction <add>, %7, %cst_1 [1] : vector<16x32xf32> to vector<16xf32>
    %9 = vector.shape_cast %8 : vector<16xf32> to vector<16x1xf32>
    %10 = tpu.reciprocal %9 {approx = true} : vector<16x1xf32> -> vector<16x1xf32>
    %11 = vector.broadcast %10 : vector<16x1xf32> to vector<16x32xf32>
    %12 = arith.mulf %7, %11 : vector<16x32xf32>
    %13 = vector.extract_strided_slice %1 {offsets = [0, 32], sizes = [16, 32], strides = [1, 1]} : vector<16x128xf32> to vector<16x32xf32>
    %cst_2 = arith.constant dense<0xFF800000> : vector<16xf32>
    %14 = vector.multi_reduction <maximumf>, %13, %cst_2 [1] : vector<16x32xf32> to vector<16xf32>
    %15 = vector.shape_cast %14 : vector<16xf32> to vector<16x1xf32>
    %16 = vector.broadcast %15 : vector<16x1xf32> to vector<16x32xf32>
    %17 = arith.subf %13, %16 : vector<16x32xf32>
    %18 = math.exp %17 : vector<16x32xf32>
    %cst_3 = arith.constant dense<0.000000e+00> : vector<16xf32>
    %19 = vector.multi_reduction <add>, %18, %cst_3 [1] : vector<16x32xf32> to vector<16xf32>
    %20 = vector.shape_cast %19 : vector<16xf32> to vector<16x1xf32>
    %21 = tpu.reciprocal %20 {approx = true} : vector<16x1xf32> -> vector<16x1xf32>
    %22 = vector.broadcast %21 : vector<16x1xf32> to vector<16x32xf32>
    %23 = arith.mulf %18, %22 : vector<16x32xf32>
    %24 = vector.extract_strided_slice %1 {offsets = [0, 64], sizes = [16, 32], strides = [1, 1]} : vector<16x128xf32> to vector<16x32xf32>
    %cst_4 = arith.constant dense<0xFF800000> : vector<16xf32>
    %25 = vector.multi_reduction <maximumf>, %24, %cst_4 [1] : vector<16x32xf32> to vector<16xf32>
    %26 = vector.shape_cast %25 : vector<16xf32> to vector<16x1xf32>
    %27 = vector.broadcast %26 : vector<16x1xf32> to vector<16x32xf32>
    %28 = arith.subf %24, %27 : vector<16x32xf32>
    %29 = math.exp %28 : vector<16x32xf32>
    %cst_5 = arith.constant dense<0.000000e+00> : vector<16xf32>
    %30 = vector.multi_reduction <add>, %29, %cst_5 [1] : vector<16x32xf32> to vector<16xf32>
    %31 = vector.shape_cast %30 : vector<16xf32> to vector<16x1xf32>
    %32 = tpu.reciprocal %31 {approx = true} : vector<16x1xf32> -> vector<16x1xf32>
    %33 = vector.broadcast %32 : vector<16x1xf32> to vector<16x32xf32>
    %34 = arith.mulf %29, %33 : vector<16x32xf32>
    %35 = vector.extract_strided_slice %1 {offsets = [0, 96], sizes = [16, 32], strides = [1, 1]} : vector<16x128xf32> to vector<16x32xf32>
    %cst_6 = arith.constant dense<0xFF800000> : vector<16xf32>
    %36 = vector.multi_reduction <maximumf>, %35, %cst_6 [1] : vector<16x32xf32> to vector<16xf32>
    %37 = vector.shape_cast %36 : vector<16xf32> to vector<16x1xf32>
    %38 = vector.broadcast %37 : vector<16x1xf32> to vector<16x32xf32>
    %39 = arith.subf %35, %38 : vector<16x32xf32>
    %40 = math.exp %39 : vector<16x32xf32>
    %cst_7 = arith.constant dense<0.000000e+00> : vector<16xf32>
    %41 = vector.multi_reduction <add>, %40, %cst_7 [1] : vector<16x32xf32> to vector<16xf32>
    %42 = vector.shape_cast %41 : vector<16xf32> to vector<16x1xf32>
    %43 = tpu.reciprocal %42 {approx = true} : vector<16x1xf32> -> vector<16x1xf32>
    %44 = vector.broadcast %43 : vector<16x1xf32> to vector<16x32xf32>
    %45 = arith.mulf %40, %44 : vector<16x32xf32>
    %46 = tpu.concatenate %12, %23, %34, %45 in 1 : vector<16x32xf32>, vector<16x32xf32>, vector<16x32xf32>, vector<16x32xf32> -> vector<16x128xf32>
    %47 = arith.truncf %46 : vector<16x128xf32> to vector<16x128xbf16>
    %c0_8 = arith.constant 0 : index
    %c0_9 = arith.constant 0 : index
    %48 = vector.load %arg2[%c0_8, %c0_9] : memref<128x32xbf16, #tpu.memory_space<vmem>>, vector<128x32xbf16>
    %cst_10 = arith.constant dense<0.000000e+00> : vector<16x32xf32>
    %49 = tpu.matmul %47, %48, %cst_10 {dimension_numbers = #tpu.dot_dimension_numbers<[1], [0], [0], [1], [0, 0, 1, 1], [], []>} : vector<16x128xbf16>, vector<128x32xbf16>, vector<16x32xf32> -> vector<16x32xf32>
    %c0_11 = arith.constant 0 : index
    %c0_12 = arith.constant 0 : index
    %50 = vector.load %arg3[%c0_11, %c0_12] : memref<16x1xf32, #tpu.memory_space<vmem>>, vector<16x1xf32>
    %cst_13 = arith.constant 2.500000e-01 : f32
    %51 = vector.broadcast %cst_13 : f32 to vector<16x1xf32>
    %52 = arith.mulf %50, %51 : vector<16x1xf32>
    %53 = vector.broadcast %52 : vector<16x1xf32> to vector<16x32xf32>
    %54 = arith.mulf %49, %53 : vector<16x32xf32>
    %c0_14 = arith.constant 0 : index
    %c0_15 = arith.constant 0 : index
    %55 = vector.load %arg5[%c0_14, %c0_15] : memref<1x32xf32, #tpu.memory_space<vmem>>, vector<1x32xf32>
    %56 = vector.broadcast %55 : vector<1x32xf32> to vector<16x32xf32>
    %57 = arith.addf %54, %56 : vector<16x32xf32>
    %c0_16 = arith.constant 0 : index
    %c0_17 = arith.constant 0 : index
    %58 = vector.load %arg4[%c0_16, %c0_17] : memref<16x32xf32, #tpu.memory_space<vmem>>, vector<16x32xf32>
    %59 = arith.addf %57, %58 : vector<16x32xf32>
    %c0_18 = arith.constant 0 : index
    %c0_19 = arith.constant 0 : index
    %60 = vector.load %arg8[%c0_18, %c0_19] : memref<16x32xf32, #tpu.memory_space<vmem>>, vector<16x32xf32>
    tpu.vector_store %arg8[%c0_18, %c0_19], %59 {strides = array<i32>} : memref<16x32xf32, #tpu.memory_space<vmem>>, vector<16x32xf32>,
    return
  }
  func.func @transform_0(%arg0: i32) -> (i32, i32) {
    %c0_i32 = arith.constant 0 : i32
    %c0_i32_0 = arith.constant 0 : i32
    return %arg0, %c0_i32 : i32, i32
  }
  func.func @transform_1(%arg0: i32) -> (i32, i32) {
    %c0_i32 = arith.constant 0 : i32
    %c0_i32_0 = arith.constant 0 : i32
    %c0_i32_1 = arith.constant 0 : i32
    return %c0_i32, %c0_i32_0 : i32, i32
  }
  func.func @transform_2(%arg0: i32) -> (i32, i32) {
    %c0_i32 = arith.constant 0 : i32
    %c0_i32_0 = arith.constant 0 : i32
    return %arg0, %c0_i32 : i32, i32
  }
  func.func @transform_3(%arg0: i32) -> (i32, i32) {
    %c0_i32 = arith.constant 0 : i32
    %c0_i32_0 = arith.constant 0 : i32
    return %arg0, %c0_i32 : i32, i32
  }
  func.func @transform_4(%arg0: i32) -> (i32, i32) {
    %c0_i32 = arith.constant 0 : i32
    %c0_i32_0 = arith.constant 0 : i32
    %c0_i32_1 = arith.constant 0 : i32
    return %c0_i32, %c0_i32_0 : i32, i32
  }
  func.func @transform_5(%arg0: i32) -> (i32, i32) {
    %c0_i32 = arith.constant 0 : i32
    %c0_i32_0 = arith.constant 0 : i32
    %c0_i32_1 = arith.constant 0 : i32
    return %c0_i32, %c0_i32_0 : i32, i32
  }
  func.func @transform_6(%arg0: i32) -> (i32, i32) {
    %c0_i32 = arith.constant 0 : i32
    %c0_i32_0 = arith.constant 0 : i32
    %c0_i32_1 = arith.constant 0 : i32
    return %c0_i32, %c0_i32_0 : i32, i32
  }
  func.func @transform_7(%arg0: i32) -> (i32, i32) {
    %c0_i32 = arith.constant 0 : i32
    %c0_i32_0 = arith.constant 0 : i32
    return %arg0, %c0_i32 : i32, i32
  }
}

</mosaic_0001>

<llo_original>
// kernel: gat_seq_forward.6
$region0: #{gat_seq_forward.6}
  #allocation0 [shape = 'u32[]', space=smem, size = 0x4, offset = 0x4, fixed_abs, tag = 'smem constant byte address 0x4 - core index']
  #allocation1 [shape = 'u32[72,128]{1,0:T(1,128)}', space=vmem, size = 0x9000, scoped, tag = 'internal scratch']
  %s0 = inlined_call_operand.vmem [shape: bf16[32,34], index: 0, kind: input, shape index: {}]
  %s1 = inlined_call_operand.vmem [shape: bf16[34,128], index: 1, kind: input, shape index: {}]
  %s2 = inlined_call_operand.vmem [shape: f32[32,128], index: 2, kind: output, shape index: {}]
  %s3 = sld [smem:[#allocation0]]
  $region41: #{gat_seq_forward.6} parent=0
    _
  %s5 = ssub.s32 1, %s3
  %s6 = scalar_select 0, %s5, %s3
  loop: start=0, step=1, limit=4
  $region2: #{gat_seq_forward.6} parent=0 // loop_pre_header
    _
  $region3: #{gat_seq_forward.6} parent=0 // loop_header
    %s8 = sphi 0, %s12
    %p9 = scmp.ge.s32.totalorder %s8, 4
    %s18 = sphi 0, %s20
    %s21 = sphi 0, %s18
    %s22 = sphi 0, %s21
    %s38 = sphi 0, %s22
    %s42 = sphi 0, %s42
    %s44 = sphi 0, %s42
    %s45 = sphi 0, %s44
    %s59 = sphi 0, %s45
    %s65 = sphi 0, %s67
    %s68 = sphi 0, %s65
    %s69 = sphi 0, %s68
    %s85 = sphi 0, %s69
  $region4: #{gat_seq_forward.6} parent=0 // loop_header_branch
    %11 = sbr.rel (%p9) target = $region8
  $region5: #{gat_seq_forward.6} parent=0 // loop_body
    %s13 = ssub.s32 %s8, 1
    %s14 = ssub.s32 %s8, 2
    %s15 = sadd.s32 %s8, 1
    %s16 = ssub.s32 %s8, %s15
    %p17 = scmp.eq.s32.totalorder %s16, 0
    %s19 = sadd.s32 %s18, 1
    %s20 = scalar_select %p17, %s18, %s19
    %p23 = pneg %p17
    %p24 = scmp.eq.s32.totalorder %s8, 1
    %p25 = por %p23, %p24
    %p26 = scmp.ne.s32.totalorder %s18, %s21
    %p27 = scmp.eq.s32.totalorder %s8, 0
    %p28 = por %p26, %p27
    %p29 = scmp.ne.s32.totalorder %s18, %s21
    %p30 = scmp.eq.s32.totalorder %s13, 1
    %p31 = por %p29, %p30
    %p32 = scmp.ne.s32.totalorder %s21, %s22
    %p33 = scmp.eq.s32.totalorder %s13, 0
    %p34 = por %p32, %p33
    %p35 = scmp.ne.s32.totalorder %s21, %s22
    %p36 = scmp.eq.s32.totalorder %s14, 1
    %p37 = por %p35, %p36
    %p39 = scmp.ne.s32.totalorder %s22, %s38
    %p40 = scmp.eq.s32.totalorder %s14, 0
    %p41 = por %p39, %p40
    %s43 = sadd.s32 %s42, 1
    %p46 = scmp.eq.s32.totalorder %s8, 1
    %p47 = scmp.ne.s32.totalorder %s42, %s44
    %p48 = scmp.eq.s32.totalorder %s8, 0
    %p49 = por %p47, %p48
    %p50 = scmp.ne.s32.totalorder %s42, %s44
    %p51 = scmp.eq.s32.totalorder %s13, 1
    %p52 = por %p50, %p51
    %p53 = scmp.ne.s32.totalorder %s44, %s45
    %p54 = scmp.eq.s32.totalorder %s13, 0
    %p55 = por %p53, %p54
    %p56 = scmp.ne.s32.totalorder %s44, %s45
    %p57 = scmp.eq.s32.totalorder %s14, 1
    %p58 = por %p56, %p57
    %p60 = scmp.ne.s32.totalorder %s45, %s59
    %p61 = scmp.eq.s32.totalorder %s14, 0
    %p62 = por %p60, %p61
    %s63 = ssub.s32 %s8, %s15
    %p64 = scmp.eq.s32.totalorder %s63, 0
    %s66 = sadd.s32 %s65, 1
    %s67 = scalar_select %p64, %s65, %s66
    %p70 = pneg %p64
    %p71 = scmp.eq.s32.totalorder %s8, 1
    %p72 = por %p70, %p71
    %p73 = scmp.ne.s32.totalorder %s65, %s68
    %p74 = scmp.eq.s32.totalorder %s8, 0
    %p75 = por %p73, %p74
    %p76 = scmp.ne.s32.totalorder %s65, %s68
    %p77 = scmp.eq.s32.totalorder %s13, 1
    %p78 = por %p76, %p77
    %p79 = scmp.ne.s32.totalorder %s68, %s69
    %p80 = scmp.eq.s32.totalorder %s13, 0
    %p81 = por %p79, %p80
    %p82 = scmp.ne.s32.totalorder %s68, %s69
    %p83 = scmp.eq.s32.totalorder %s14, 1
    %p84 = por %p82, %p83
    %p86 = scmp.ne.s32.totalorder %s69, %s85
    %p87 = scmp.eq.s32.totalorder %s14, 0
    %p88 = por %p86, %p87
    %p89 = scmp.le.s32.totalorder 1, %s8
    %p90 = scmp.lt.s32.totalorder %s8, 3
    %p91 = pnand %p89, %p90
    %p92 = pneg %p91
    // Predicated region
    $region9: #{gat_seq_forward.6} parent=5 // pred_check
      _
    $region10: #{gat_seq_forward.6} parent=5 // pred_check_branch
      %94 = sbr.rel (%p91) target = $region12
    $region11: #{gat_seq_forward.6} parent=5 // pred_region
      %s95 = ssub.s32 %s8, 1
      // Predicated region
      $region13: #{gat_seq_forward.6} parent=11 // pred_check
        %p96 = pneg %p55
      $region14: #{gat_seq_forward.6} parent=11 // pred_check_branch
        %98 = sbr.rel (%p96) target = $region16
      $region15: #{gat_seq_forward.6} parent=11 // pred_region
        _
      $region16: #{gat_seq_forward.6} parent=11 // pred_fallthru
        _
    $region12: #{gat_seq_forward.6} parent=5 // pred_fallthru
      _
    %p99 = scmp.lt.s32.totalorder %s8, 2
    // Predicated region
    $region17: #{gat_seq_forward.6} parent=5 // pred_check
      %p100 = pneg %p99
    $region18: #{gat_seq_forward.6} parent=5 // pred_check_branch
      %102 = sbr.rel (%p100) target = $region20
    $region19: #{gat_seq_forward.6} parent=5 // pred_region
      // Predicated region
      $region21: #{gat_seq_forward.6} parent=19 // pred_check
        %p103 = pneg %p28
      $region22: #{gat_seq_forward.6} parent=19 // pred_check_branch
        %105 = sbr.rel (%p103) target = $region24
      $region23: #{gat_seq_forward.6} parent=19 // pred_region
        %s106 = smul.u32 2, %s8
        %p107 = scmp.lt.s32.totalorder %s106, 3
        %s108 = scalar_select %p107, %s106, 3
        %s109 = smul.addr %s108, 4
        %s110 = scalar_lea.vmem %s0, %s109
        %s111 = smul.u32 2, %s8
      $region24: #{gat_seq_forward.6} parent=19 // pred_fallthru
        _
    $region20: #{gat_seq_forward.6} parent=5 // pred_fallthru
      _
    %p112 = scmp.le.s32.totalorder 1, %s8
    %p113 = scmp.lt.s32.totalorder %s8, 3
    %p114 = pnand %p112, %p113
    %p115 = pneg %p114
    // Predicated region
    $region25: #{gat_seq_forward.6} parent=5 // pred_check
      _
    $region26: #{gat_seq_forward.6} parent=5 // pred_check_branch
      %117 = sbr.rel (%p114) target = $region28
    $region27: #{gat_seq_forward.6} parent=5 // pred_region
      %s118 = ssub.s32 %s8, 1
      %s119 = smul.u32 2, %s13
      %p120 = scmp.lt.s32.totalorder %s119, 3
      %s121 = scalar_select %p120, %s119, 3
      %s122 = smul.addr %s121, 4
      %s123 = scalar_lea.vmem %s0, %s122
      %p124 = pneg %p34
      %p125 = pneg %p31
      %p126 = pneg %p55
      %p127 = pneg %p52
      %p128 = pneg %p81
      %p129 = pneg %p78
      %s130 = smul.u32 2, %s13
      %p131 = scmp.lt.s32.totalorder %s130, 3
      %s132 = scalar_select %p131, %s130, 3
      %s133 = smul.addr %s132, 8
      %s134 = scalar_lea.vmem %s2, %s133
      %s135 = smul.u32 2, %s13
      %p136 = scmp.lt.s32.totalorder %s135, 3
      %s137 = scalar_select %p136, %s135, 3
      %s138 = smul.addr %s137, 4
      %s139 = scalar_lea.vmem %s0, %s138
      %s140 = smul.u32 2, %s13
      %s141 = smul.u32 2, %s13
      %p142 = scmp.lt.s32.totalorder %s141, 3
      %s143 = scalar_select %p142, %s141, 3
      %s144 = smul.addr %s143, 8
      %s145 = scalar_lea.vmem %s2, %s144
      %s146 = smul.u32 2, %s13
      %v148 = vld [vmem:[%s139] sm:$0xf]
      %v149 = vld [vmem:[%s139 + $0x4] sm:$0xf]
      %v150 = vld [vmem:[%s1] sm:$0xf]
      %v151 = vld [vmem:[%s1 + $0x4] sm:$0xf]
      %v152 = vld [vmem:[%s1 + $0x8] sm:$0xf]
      %v153 = vld [vmem:[%s1 + $0xc] sm:$0xf]
      %v154 = vld [vmem:[%s1 + $0x10] sm:$0x1]
      %v157 = vunpack.c.l.b16 %v148
      %v158 = vunpack.c.l.b16 %v149
      %v159 = vpack.c.b16 %v158, %v157
      %v165 = vunpack.c.l.b16 %v150
      %v166 = vunpack.c.l.b16 %v151
      %v167 = vunpack.c.l.b16 %v152
      %v168 = vunpack.c.l.b16 %v153
      %v169 = vunpack.c.l.b16 %v154
      %v170 = vpack.c.b16 %v166, %v165
      %v171 = vpack.c.b16 %v168, %v167
      %v172 = vpack.c.b16 %v169, %v169
      %vm175 = vcmask 277504
      %v177 = vsel %vm175, %v159, 0
      %vm179 = vcmask 1040384
      %v181 = vsel %vm179, %v172, 0
      %183 = vmatpush.bf16.msra.mxu0 0
      %184 = vmatpush.bf16.msra.mxu0 0
      %185 = vmatpush.bf16.msra.mxu0 0
      %186 = vmatpush.bf16.msra.mxu0 0
      %187 = vmatpush.bf16.msra.mxu0 0
      %188 = vmatpush.bf16.msra.mxu0 %v181
      %189 = vmatpush.bf16.msra.mxu0 %v171
      %190 = vmatpush.bf16.msra.mxu0 %v170
      %191 = vmatmul.bf16.gmra.mxu0 %v177
      %v192 = vpop.f32.mrf.mxu0
      %v193 = vadd.f32 0.0, %v192
      %v194 = vpop.f32.mrf.mxu0
      %v195 = vadd.f32 0.0, %v194
      %196 = vdwg.mxu0
      %197 = vst [vmem:[%s145] sm:$0xff] %v193
      %198 = vst [vmem:[%s145 + $0x8] sm:$0xff] %v195
      %s199 = smul.u32 2, %s13
      %p200 = scmp.lt.s32.totalorder %s199, 3
      %s201 = scalar_select %p200, %s199, 3
      %s202 = smul.addr %s201, 8
      %s203 = scalar_lea.vmem %s2, %s202
      // Predicated region
      $region29: #{gat_seq_forward.6} parent=27 // pred_check
        %p204 = pneg %p78
      $region30: #{gat_seq_forward.6} parent=27 // pred_check_branch
        %206 = sbr.rel (%p204) target = $region32
      $region31: #{gat_seq_forward.6} parent=27 // pred_region
        %s207 = smul.u32 2, %s13
      $region32: #{gat_seq_forward.6} parent=27 // pred_fallthru
        _
    $region28: #{gat_seq_forward.6} parent=5 // pred_fallthru
      _
    %p208 = scmp.le.s32.totalorder 2, %s8
    // Predicated region
    $region33: #{gat_seq_forward.6} parent=5 // pred_check
      %p209 = pneg %p208
    $region34: #{gat_seq_forward.6} parent=5 // pred_check_branch
      %211 = sbr.rel (%p209) target = $region36
    $region35: #{gat_seq_forward.6} parent=5 // pred_region
      %s212 = ssub.s32 %s8, 2
      // Predicated region
      $region37: #{gat_seq_forward.6} parent=35 // pred_check
        %p213 = pneg %p84
      $region38: #{gat_seq_forward.6} parent=35 // pred_check_branch
        %215 = sbr.rel (%p213) target = $region40
      $region39: #{gat_seq_forward.6} parent=35 // pred_region
        %s216 = smul.u32 2, %s14
        %p217 = scmp.lt.s32.totalorder %s216, 3
        %s218 = scalar_select %p217, %s216, 3
        %s219 = smul.addr %s218, 8
        %s220 = scalar_lea.vmem %s2, %s219
      $region40: #{gat_seq_forward.6} parent=35 // pred_fallthru
        _
    $region36: #{gat_seq_forward.6} parent=5 // pred_fallthru
      _
  $region6: #{gat_seq_forward.6} parent=0 // loop_footer
    %s12 = sadd.s32 1, %s8
  $region7: #{gat_seq_forward.6} parent=0 // loop_footer_branch
    %7 = sbr.rel target = $region3
  $region8: #{gat_seq_forward.6} parent=0 // loop_exit
    _

// kernel: gat_seq_forward.7
$region0: #{gat_seq_forward.7}
  #allocation0 [shape = 'u32[]', space=smem, size = 0x4, offset = 0x4, fixed_abs, tag = 'smem constant byte address 0x4 - core index']
  #allocation1 [shape = 'u32[72,128]{1,0:T(1,128)}', space=vmem, size = 0x9000, scoped, tag = 'internal scratch']
  %s0 = inlined_call_operand.vmem [shape: bf16[32,128], index: 0, kind: input, shape index: {}]
  %s1 = inlined_call_operand.vmem [shape: bf16[128,32], index: 1, kind: input, shape index: {}]
  %s2 = inlined_call_operand.vmem [shape: f32[32,1], index: 2, kind: input, shape index: {}]
  %s3 = inlined_call_operand.vmem [shape: f32[32,32], index: 3, kind: input, shape index: {}]
  %s4 = inlined_call_operand.vmem [shape: f32[1,32], index: 4, kind: input, shape index: {}]
  %s5 = inlined_call_operand.vmem [shape: f32[1,32], index: 5, kind: input, shape index: {}]
  %s6 = inlined_call_operand.vmem [shape: f32[1,32], index: 6, kind: input, shape index: {}]
  %s7 = inlined_call_operand.vmem [shape: f32[32,32], index: 7, kind: output, shape index: {}]
  %s8 = sld [smem:[#allocation0]]
  $region61: #{gat_seq_forward.7} parent=0
    _
  %s10 = ssub.s32 1, %s8
  %s11 = scalar_select 0, %s10, %s8
  loop: start=0, step=1, limit=4
  $region2: #{gat_seq_forward.7} parent=0 // loop_pre_header
    _
  $region3: #{gat_seq_forward.7} parent=0 // loop_header
    %s13 = sphi 0, %s17
    %p14 = scmp.ge.s32.totalorder %s13, 4
    %s23 = sphi 0, %s25
    %s26 = sphi 0, %s23
    %s27 = sphi 0, %s26
    %s43 = sphi 0, %s27
    %s47 = sphi 0, %s47
    %s49 = sphi 0, %s47
    %s50 = sphi 0, %s49
    %s64 = sphi 0, %s50
    %s70 = sphi 0, %s72
    %s73 = sphi 0, %s70
    %s74 = sphi 0, %s73
    %s90 = sphi 0, %s74
    %s96 = sphi 0, %s98
    %s99 = sphi 0, %s96
    %s100 = sphi 0, %s99
    %s116 = sphi 0, %s100
    %s120 = sphi 0, %s120
    %s122 = sphi 0, %s120
    %s123 = sphi 0, %s122
    %s137 = sphi 0, %s123
    %s141 = sphi 0, %s141
    %s143 = sphi 0, %s141
    %s144 = sphi 0, %s143
    %s158 = sphi 0, %s144
    %s162 = sphi 0, %s162
    %s164 = sphi 0, %s162
    %s165 = sphi 0, %s164
    %s179 = sphi 0, %s165
    %s185 = sphi 0, %s187
    %s188 = sphi 0, %s185
    %s189 = sphi 0, %s188
    %s205 = sphi 0, %s189
  $region4: #{gat_seq_forward.7} parent=0 // loop_header_branch
    %16 = sbr.rel (%p14) target = $region8
  $region5: #{gat_seq_forward.7} parent=0 // loop_body
    %s18 = ssub.s32 %s13, 1
    %s19 = ssub.s32 %s13, 2
    %s20 = sadd.s32 %s13, 1
    %s21 = ssub.s32 %s13, %s20
    %p22 = scmp.eq.s32.totalorder %s21, 0
    %s24 = sadd.s32 %s23, 1
    %s25 = scalar_select %p22, %s23, %s24
    %p28 = pneg %p22
    %p29 = scmp.eq.s32.totalorder %s13, 1
    %p30 = por %p28, %p29
    %p31 = scmp.ne.s32.totalorder %s23, %s26
    %p32 = scmp.eq.s32.totalorder %s13, 0
    %p33 = por %p31, %p32
    %p34 = scmp.ne.s32.totalorder %s23, %s26
    %p35 = scmp.eq.s32.totalorder %s18, 1
    %p36 = por %p34, %p35
    %p37 = scmp.ne.s32.totalorder %s26, %s27
    %p38 = scmp.eq.s32.totalorder %s18, 0
    %p39 = por %p37, %p38
    %p40 = scmp.ne.s32.totalorder %s26, %s27
    %p41 = scmp.eq.s32.totalorder %s19, 1
    %p42 = por %p40, %p41
    %p44 = scmp.ne.s32.totalorder %s27, %s43
    %p45 = scmp.eq.s32.totalorder %s19, 0
    %p46 = por %p44, %p45
    %s48 = sadd.s32 %s47, 1
    %p51 = scmp.eq.s32.totalorder %s13, 1
    %p52 = scmp.ne.s32.totalorder %s47, %s49
    %p53 = scmp.eq.s32.totalorder %s13, 0
    %p54 = por %p52, %p53
    %p55 = scmp.ne.s32.totalorder %s47, %s49
    %p56 = scmp.eq.s32.totalorder %s18, 1
    %p57 = por %p55, %p56
    %p58 = scmp.ne.s32.totalorder %s49, %s50
    %p59 = scmp.eq.s32.totalorder %s18, 0
    %p60 = por %p58, %p59
    %p61 = scmp.ne.s32.totalorder %s49, %s50
    %p62 = scmp.eq.s32.totalorder %s19, 1
    %p63 = por %p61, %p62
    %p65 = scmp.ne.s32.totalorder %s50, %s64
    %p66 = scmp.eq.s32.totalorder %s19, 0
    %p67 = por %p65, %p66
    %s68 = ssub.s32 %s13, %s20
    %p69 = scmp.eq.s32.totalorder %s68, 0
    %s71 = sadd.s32 %s70, 1
    %s72 = scalar_select %p69, %s70, %s71
    %p75 = pneg %p69
    %p76 = scmp.eq.s32.totalorder %s13, 1
    %p77 = por %p75, %p76
    %p78 = scmp.ne.s32.totalorder %s70, %s73
    %p79 = scmp.eq.s32.totalorder %s13, 0
    %p80 = por %p78, %p79
    %p81 = scmp.ne.s32.totalorder %s70, %s73
    %p82 = scmp.eq.s32.totalorder %s18, 1
    %p83 = por %p81, %p82
    %p84 = scmp.ne.s32.totalorder %s73, %s74
    %p85 = scmp.eq.s32.totalorder %s18, 0
    %p86 = por %p84, %p85
    %p87 = scmp.ne.s32.totalorder %s73, %s74
    %p88 = scmp.eq.s32.totalorder %s19, 1
    %p89 = por %p87, %p88
    %p91 = scmp.ne.s32.totalorder %s74, %s90
    %p92 = scmp.eq.s32.totalorder %s19, 0
    %p93 = por %p91, %p92
    %s94 = ssub.s32 %s13, %s20
    %p95 = scmp.eq.s32.totalorder %s94, 0
    %s97 = sadd.s32 %s96, 1
    %s98 = scalar_select %p95, %s96, %s97
    %p101 = pneg %p95
    %p102 = scmp.eq.s32.totalorder %s13, 1
    %p103 = por %p101, %p102
    %p104 = scmp.ne.s32.totalorder %s96, %s99
    %p105 = scmp.eq.s32.totalorder %s13, 0
    %p106 = por %p104, %p105
    %p107 = scmp.ne.s32.totalorder %s96, %s99
    %p108 = scmp.eq.s32.totalorder %s18, 1
    %p109 = por %p107, %p108
    %p110 = scmp.ne.s32.totalorder %s99, %s100
    %p111 = scmp.eq.s32.totalorder %s18, 0
    %p112 = por %p110, %p111
    %p113 = scmp.ne.s32.totalorder %s99, %s100
    %p114 = scmp.eq.s32.totalorder %s19, 1
    %p115 = por %p113, %p114
    %p117 = scmp.ne.s32.totalorder %s100, %s116
    %p118 = scmp.eq.s32.totalorder %s19, 0
    %p119 = por %p117, %p118
    %s121 = sadd.s32 %s120, 1
    %p124 = scmp.eq.s32.totalorder %s13, 1
    %p125 = scmp.ne.s32.totalorder %s120, %s122
    %p126 = scmp.eq.s32.totalorder %s13, 0
    %p127 = por %p125, %p126
    %p128 = scmp.ne.s32.totalorder %s120, %s122
    %p129 = scmp.eq.s32.totalorder %s18, 1
    %p130 = por %p128, %p129
    %p131 = scmp.ne.s32.totalorder %s122, %s123
    %p132 = scmp.eq.s32.totalorder %s18, 0
    %p133 = por %p131, %p132
    %p134 = scmp.ne.s32.totalorder %s122, %s123
    %p135 = scmp.eq.s32.totalorder %s19, 1
    %p136 = por %p134, %p135
    %p138 = scmp.ne.s32.totalorder %s123, %s137
    %p139 = scmp.eq.s32.totalorder %s19, 0
    %p140 = por %p138, %p139
    %s142 = sadd.s32 %s141, 1
    %p145 = scmp.eq.s32.totalorder %s13, 1
    %p146 = scmp.ne.s32.totalorder %s141, %s143
    %p147 = scmp.eq.s32.totalorder %s13, 0
    %p148 = por %p146, %p147
    %p149 = scmp.ne.s32.totalorder %s141, %s143
    %p150 = scmp.eq.s32.totalorder %s18, 1
    %p151 = por %p149, %p150
    %p152 = scmp.ne.s32.totalorder %s143, %s144
    %p153 = scmp.eq.s32.totalorder %s18, 0
    %p154 = por %p152, %p153
    %p155 = scmp.ne.s32.totalorder %s143, %s144
    %p156 = scmp.eq.s32.totalorder %s19, 1
    %p157 = por %p155, %p156
    %p159 = scmp.ne.s32.totalorder %s144, %s158
    %p160 = scmp.eq.s32.totalorder %s19, 0
    %p161 = por %p159, %p160
    %s163 = sadd.s32 %s162, 1
    %p166 = scmp.eq.s32.totalorder %s13, 1
    %p167 = scmp.ne.s32.totalorder %s162, %s164
    %p168 = scmp.eq.s32.totalorder %s13, 0
    %p169 = por %p167, %p168
    %p170 = scmp.ne.s32.totalorder %s162, %s164
    %p171 = scmp.eq.s32.totalorder %s18, 1
    %p172 = por %p170, %p171
    %p173 = scmp.ne.s32.totalorder %s164, %s165
    %p174 = scmp.eq.s32.totalorder %s18, 0
    %p175 = por %p173, %p174
    %p176 = scmp.ne.s32.totalorder %s164, %s165
    %p177 = scmp.eq.s32.totalorder %s19, 1
    %p178 = por %p176, %p177
    %p180 = scmp.ne.s32.totalorder %s165, %s179
    %p181 = scmp.eq.s32.totalorder %s19, 0
    %p182 = por %p180, %p181
    %s183 = ssub.s32 %s13, %s20
    %p184 = scmp.eq.s32.totalorder %s183, 0
    %s186 = sadd.s32 %s185, 1
    %s187 = scalar_select %p184, %s185, %s186
    %p190 = pneg %p184
    %p191 = scmp.eq.s32.totalorder %s13, 1
    %p192 = por %p190, %p191
    %p193 = scmp.ne.s32.totalorder %s185, %s188
    %p194 = scmp.eq.s32.totalorder %s13, 0
    %p195 = por %p193, %p194
    %p196 = scmp.ne.s32.totalorder %s185, %s188
    %p197 = scmp.eq.s32.totalorder %s18, 1
    %p198 = por %p196, %p197
    %p199 = scmp.ne.s32.totalorder %s188, %s189
    %p200 = scmp.eq.s32.totalorder %s18, 0
    %p201 = por %p199, %p200
    %p202 = scmp.ne.s32.totalorder %s188, %s189
    %p203 = scmp.eq.s32.totalorder %s19, 1
    %p204 = por %p202, %p203
    %p206 = scmp.ne.s32.totalorder %s189, %s205
    %p207 = scmp.eq.s32.totalorder %s19, 0
    %p208 = por %p206, %p207
    %p209 = scmp.le.s32.totalorder 1, %s13
    %p210 = scmp.lt.s32.totalorder %s13, 3
    %p211 = pnand %p209, %p210
    %p212 = pneg %p211
    // Predicated region
    $region9: #{gat_seq_forward.7} parent=5 // pred_check
      _
    $region10: #{gat_seq_forward.7} parent=5 // pred_check_branch
      %214 = sbr.rel (%p211) target = $region12
    $region11: #{gat_seq_forward.7} parent=5 // pred_region
      %s215 = ssub.s32 %s13, 1
      // Predicated region
      $region13: #{gat_seq_forward.7} parent=11 // pred_check
        %p216 = pneg %p60
      $region14: #{gat_seq_forward.7} parent=11 // pred_check_branch
        %218 = sbr.rel (%p216) target = $region16
      $region15: #{gat_seq_forward.7} parent=11 // pred_region
        _
      $region16: #{gat_seq_forward.7} parent=11 // pred_fallthru
        _
      // Predicated region
      $region17: #{gat_seq_forward.7} parent=11 // pred_check
        %p219 = pneg %p133
      $region18: #{gat_seq_forward.7} parent=11 // pred_check_branch
        %221 = sbr.rel (%p219) target = $region20
      $region19: #{gat_seq_forward.7} parent=11 // pred_region
        _
      $region20: #{gat_seq_forward.7} parent=11 // pred_fallthru
        _
      // Predicated region
      $region21: #{gat_seq_forward.7} parent=11 // pred_check
        %p222 = pneg %p154
      $region22: #{gat_seq_forward.7} parent=11 // pred_check_branch
        %224 = sbr.rel (%p222) target = $region24
      $region23: #{gat_seq_forward.7} parent=11 // pred_region
        _
      $region24: #{gat_seq_forward.7} parent=11 // pred_fallthru
        _
      // Predicated region
      $region25: #{gat_seq_forward.7} parent=11 // pred_check
        %p225 = pneg %p175
      $region26: #{gat_seq_forward.7} parent=11 // pred_check_branch
        %227 = sbr.rel (%p225) target = $region28
      $region27: #{gat_seq_forward.7} parent=11 // pred_region
        _
      $region28: #{gat_seq_forward.7} parent=11 // pred_fallthru
        _
    $region12: #{gat_seq_forward.7} parent=5 // pred_fallthru
      _
    %p228 = scmp.lt.s32.totalorder %s13, 2
    // Predicated region
    $region29: #{gat_seq_forward.7} parent=5 // pred_check
      %p229 = pneg %p228
    $region30: #{gat_seq_forward.7} parent=5 // pred_check_branch
      %231 = sbr.rel (%p229) target = $region32
    $region31: #{gat_seq_forward.7} parent=5 // pred_region
      // Predicated region
      $region33: #{gat_seq_forward.7} parent=31 // pred_check
        %p232 = pneg %p33
      $region34: #{gat_seq_forward.7} parent=31 // pred_check_branch
        %234 = sbr.rel (%p232) target = $region36
      $region35: #{gat_seq_forward.7} parent=31 // pred_region
        %s235 = smul.u32 2, %s13
        %p236 = scmp.lt.s32.totalorder %s235, 3
        %s237 = scalar_select %p236, %s235, 3
        %s238 = smul.addr %s237, 4
        %s239 = scalar_lea.vmem %s0, %s238
        %s240 = smul.u32 2, %s13
      $region36: #{gat_seq_forward.7} parent=31 // pred_fallthru
        _
      // Predicated region
      $region37: #{gat_seq_forward.7} parent=31 // pred_check
        %p241 = pneg %p80
      $region38: #{gat_seq_forward.7} parent=31 // pred_check_branch
        %243 = sbr.rel (%p241) target = $region40
      $region39: #{gat_seq_forward.7} parent=31 // pred_region
        %s244 = smul.u32 2, %s13
        %p245 = scmp.lt.s32.totalorder %s244, 3
        %s246 = scalar_select %p245, %s244, 3
        %s247 = smul.addr %s246, 8
        %s248 = scalar_lea.vmem %s2, %s247
        %s249 = smul.u32 2, %s13
      $region40: #{gat_seq_forward.7} parent=31 // pred_fallthru
        _
      // Predicated region
      $region41: #{gat_seq_forward.7} parent=31 // pred_check
        %p250 = pneg %p106
      $region42: #{gat_seq_forward.7} parent=31 // pred_check_branch
        %252 = sbr.rel (%p250) target = $region44
      $region43: #{gat_seq_forward.7} parent=31 // pred_region
        %s253 = smul.u32 2, %s13
        %p254 = scmp.lt.s32.totalorder %s253, 3
        %s255 = scalar_select %p254, %s253, 3
        %s256 = smul.addr %s255, 8
        %s257 = scalar_lea.vmem %s3, %s256
        %s258 = smul.u32 2, %s13
      $region44: #{gat_seq_forward.7} parent=31 // pred_fallthru
        _
    $region32: #{gat_seq_forward.7} parent=5 // pred_fallthru
      _
    %p259 = scmp.le.s32.totalorder 1, %s13
    %p260 = scmp.lt.s32.totalorder %s13, 3
    %p261 = pnand %p259, %p260
    %p262 = pneg %p261
    // Predicated region
    $region45: #{gat_seq_forward.7} parent=5 // pred_check
      _
    $region46: #{gat_seq_forward.7} parent=5 // pred_check_branch
      %264 = sbr.rel (%p261) target = $region48
    $region47: #{gat_seq_forward.7} parent=5 // pred_region
      %s265 = ssub.s32 %s13, 1
      %s266 = smul.u32 2, %s18
      %p267 = scmp.lt.s32.totalorder %s266, 3
      %s268 = scalar_select %p267, %s266, 3
      %s269 = smul.addr %s268, 4
      %s270 = scalar_lea.vmem %s0, %s269
      %p271 = pneg %p39
      %p272 = pneg %p36
      %p273 = pneg %p60
      %p274 = pneg %p57
      %s275 = smul.u32 2, %s18
      %p276 = scmp.lt.s32.totalorder %s275, 3
      %s277 = scalar_select %p276, %s275, 3
      %s278 = smul.addr %s277, 8
      %s279 = scalar_lea.vmem %s2, %s278
      %p280 = pneg %p86
      %p281 = pneg %p83
      %s282 = smul.u32 2, %s18
      %p283 = scmp.lt.s32.totalorder %s282, 3
      %s284 = scalar_select %p283, %s282, 3
      %s285 = smul.addr %s284, 8
      %s286 = scalar_lea.vmem %s3, %s285
      %p287 = pneg %p112
      %p288 = pneg %p109
      %p289 = pneg %p133
      %p290 = pneg %p130
      %p291 = pneg %p154
      %p292 = pneg %p151
      %p293 = pneg %p175
      %p294 = pneg %p172
      %p295 = pneg %p201
      %p296 = pneg %p198
      %s297 = smul.u32 2, %s18
      %p298 = scmp.lt.s32.totalorder %s297, 3
      %s299 = scalar_select %p298, %s297, 3
      %s300 = smul.addr %s299, 8
      %s301 = scalar_lea.vmem %s7, %s300
      %s302 = smul.u32 2, %s18
      %p303 = scmp.lt.s32.totalorder %s302, 3
      %s304 = scalar_select %p303, %s302, 3
      %s305 = smul.addr %s304, 4
      %s306 = scalar_lea.vmem %s0, %s305
      %s307 = smul.u32 2, %s18
      %s308 = smul.u32 2, %s18
      %p309 = scmp.lt.s32.totalorder %s308, 3
      %s310 = scalar_select %p309, %s308, 3
      %s311 = smul.addr %s310, 8
      %s312 = scalar_lea.vmem %s2, %s311
      %s313 = smul.u32 2, %s18
      %s314 = smul.u32 2, %s18
      %p315 = scmp.lt.s32.totalorder %s314, 3
      %s316 = scalar_select %p315, %s314, 3
      %s317 = smul.addr %s316, 8
      %s318 = scalar_lea.vmem %s3, %s317
      %s319 = smul.u32 2, %s18
      %s320 = smul.u32 2, %s18
      %p321 = scmp.lt.s32.totalorder %s320, 3
      %s322 = scalar_select %p321, %s320, 3
      %s323 = smul.addr %s322, 8
      %s324 = scalar_lea.vmem %s7, %s323
      %s325 = smul.u32 2, %s18
      %v326 = vld [vmem:[%s306] sm:$0xf]
      %v327 = vld [vmem:[%s306 + $0x4] sm:$0xf]
      %v328 = vunpack.c.l.bf16 %v326
      %v329 = vunpack.c.l.bf16 %v327
      %vm330 = vcmask 261120
      %v331 = vsel %vm330, %v328, -inf
      %332 = vmax.xlane.f32.xlu0 %v331
      %v333 = vpop.xlane.xlu0 %332
      %v334 = vsel %vm330, %v329, -inf
      %335 = vmax.xlane.f32.xlu0 %v334
      %v336 = vpop.xlane.xlu0 %335
      %v337 = vsub.f32 %v328, %v333
      %v338 = vsub.f32 %v329, %v336
      %v339 = vmul.f32 %v337, 1.442695
      %v340 = vpow.pop %v339
      %v341 = vmul.f32 %v338, 1.442695
      %v342 = vpow.pop %v341
      %v343 = vsel %vm330, %v340, 0.0
      %344 = vadd.xlane.f32.xlu0 %v343
      %v345 = vpop.xlane.xlu0 %344
      %v346 = vsel %vm330, %v342, 0.0
      %347 = vadd.xlane.f32.xlu0 %v346
      %v348 = vpop.xlane.xlu0 %347
      %v349 = vrcp.pop %v345
      %v350 = vrcp.pop %v348
      %v351 = vmul.f32 %v340, %v349
      %v352 = vmul.f32 %v342, %v350
      %vm353 = vcmask 523520
      %v354 = vsel %vm353, %v328, -inf
      %355 = vmax.xlane.f32.xlu0 %v354
      %v356 = vpop.xlane.xlu0 %355
      %v357 = vsel %vm353, %v329, -inf
      %358 = vmax.xlane.f32.xlu0 %v357
      %v359 = vpop.xlane.xlu0 %358
      %v360 = vsub.f32 %v328, %v356
      %v361 = vsub.f32 %v329, %v359
      %v362 = vmul.f32 %v360, 1.442695
      %v363 = vpow.pop %v362
      %v364 = vmul.f32 %v361, 1.442695
      %v365 = vpow.pop %v364
      %368 = vrot.lane.b32.xlu0 %v363, 96
      %v369 = vpop.permute.xlu0 %368
      %370 = vrot.lane.b32.xlu0 %v365, 96
      %v371 = vpop.permute.xlu0 %370
      %v374 = vsel %vm330, %v369, 0.0
      %375 = vadd.xlane.f32.xlu0 %v374
      %v376 = vpop.xlane.xlu0 %375
      %v377 = vsel %vm330, %v371, 0.0
      %378 = vadd.xlane.f32.xlu0 %v377
      %v379 = vpop.xlane.xlu0 %378
      %v380 = vrcp.pop %v376
      %v381 = vrcp.pop %v379
      %v382 = vmul.f32 %v363, %v380
      %v383 = vmul.f32 %v365, %v381
      %vm384 = vcmask 785920
      %v385 = vsel %vm384, %v328, -inf
      %386 = vmax.xlane.f32.xlu0 %v385
      %v387 = vpop.xlane.xlu0 %386
      %v388 = vsel %vm384, %v329, -inf
      %389 = vmax.xlane.f32.xlu0 %v388
      %v390 = vpop.xlane.xlu0 %389
      %v391 = vsub.f32 %v328, %v387
      %v392 = vsub.f32 %v329, %v390
      %v393 = vmul.f32 %v391, 1.442695
      %v394 = vpow.pop %v393
      %v395 = vmul.f32 %v392, 1.442695
      %v396 = vpow.pop %v395
      %399 = vrot.lane.b32.xlu0 %v394, 64
      %v400 = vpop.permute.xlu0 %399
      %401 = vrot.lane.b32.xlu0 %v396, 64
      %v402 = vpop.permute.xlu0 %401
      %v405 = vsel %vm330, %v400, 0.0
      %406 = vadd.xlane.f32.xlu0 %v405
      %v407 = vpop.xlane.xlu0 %406
      %v408 = vsel %vm330, %v402, 0.0
      %409 = vadd.xlane.f32.xlu0 %v408
      %v410 = vpop.xlane.xlu0 %409
      %v411 = vrcp.pop %v407
      %v412 = vrcp.pop %v410
      %v413 = vmul.f32 %v394, %v411
      %v414 = vmul.f32 %v396, %v412
      %vm415 = vcmask 1048320
      %v416 = vsel %vm415, %v328, -inf
      %417 = vmax.xlane.f32.xlu0 %v416
      %v418 = vpop.xlane.xlu0 %417
      %v419 = vsel %vm415, %v329, -inf
      %420 = vmax.xlane.f32.xlu0 %v419
      %v421 = vpop.xlane.xlu0 %420
      %v422 = vsub.f32 %v328, %v418
      %v423 = vsub.f32 %v329, %v421
      %v424 = vmul.f32 %v422, 1.442695
      %v425 = vpow.pop %v424
      %v426 = vmul.f32 %v423, 1.442695
      %v427 = vpow.pop %v426
      %430 = vrot.lane.b32.xlu0 %v425, 32
      %v431 = vpop.permute.xlu0 %430
      %432 = vrot.lane.b32.xlu0 %v427, 32
      %v433 = vpop.permute.xlu0 %432
      %v436 = vsel %vm330, %v431, 0.0
      %437 = vadd.xlane.f32.xlu0 %v436
      %v438 = vpop.xlane.xlu0 %437
      %v439 = vsel %vm330, %v433, 0.0
      %440 = vadd.xlane.f32.xlu0 %v439
      %v441 = vpop.xlane.xlu0 %440
      %v442 = vrcp.pop %v438
      %v443 = vrcp.pop %v441
      %v444 = vmul.f32 %v425, %v442
      %v445 = vmul.f32 %v427, %v443
      %v446 = vsel %vm330, %v351, %v382
      %v447 = vsel %vm330, %v352, %v383
      %vm448 = vcmask 523264
      %v449 = vsel %vm448, %v446, %v413
      %v450 = vsel %vm448, %v447, %v414
      %vm451 = vcmask 785408
      %v452 = vsel %vm451, %v449, %v444
      %v453 = vsel %vm451, %v450, %v445
      %v454 = vpack.c.bf16 %v453, %v452
      %v455 = vld [vmem:[%s1] sm:$0xf]
      %v456 = vld [vmem:[%s1 + $0x4] sm:$0xf]
      %v457 = vld [vmem:[%s1 + $0x8] sm:$0xf]
      %v458 = vld [vmem:[%s1 + $0xc] sm:$0xf]
      %v459 = vld [vmem:[%s1 + $0x10] sm:$0xf]
      %v460 = vld [vmem:[%s1 + $0x14] sm:$0xf]
      %v461 = vld [vmem:[%s1 + $0x18] sm:$0xf]
      %v462 = vld [vmem:[%s1 + $0x1c] sm:$0xf]
      %v463 = vld [vmem:[%s1 + $0x20] sm:$0xf]
      %v464 = vld [vmem:[%s1 + $0x24] sm:$0xf]
      %v465 = vld [vmem:[%s1 + $0x28] sm:$0xf]
      %v466 = vld [vmem:[%s1 + $0x2c] sm:$0xf]
      %v467 = vld [vmem:[%s1 + $0x30] sm:$0xf]
      %v468 = vld [vmem:[%s1 + $0x34] sm:$0xf]
      %v469 = vld [vmem:[%s1 + $0x38] sm:$0xf]
      %v470 = vld [vmem:[%s1 + $0x3c] sm:$0xf]
      %v487 = vunpack.c.l.b16 %v455
      %v488 = vunpack.c.l.b16 %v456
      %v489 = vunpack.c.l.b16 %v457
      %v490 = vunpack.c.l.b16 %v458
      %v491 = vunpack.c.l.b16 %v459
      %v492 = vunpack.c.l.b16 %v460
      %v493 = vunpack.c.l.b16 %v461
      %v494 = vunpack.c.l.b16 %v462
      %v495 = vunpack.c.l.b16 %v463
      %v496 = vunpack.c.l.b16 %v464
      %v497 = vunpack.c.l.b16 %v465
      %v498 = vunpack.c.l.b16 %v466
      %v499 = vunpack.c.l.b16 %v467
      %v500 = vunpack.c.l.b16 %v468
      %v501 = vunpack.c.l.b16 %v469
      %v502 = vunpack.c.l.b16 %v470
      %v503 = vpack.c.b16 %v488, %v487
      %v504 = vpack.c.b16 %v490, %v489
      %v505 = vpack.c.b16 %v492, %v491
      %v506 = vpack.c.b16 %v494, %v493
      %v507 = vpack.c.b16 %v496, %v495
      %v508 = vpack.c.b16 %v498, %v497
      %v509 = vpack.c.b16 %v500, %v499
      %v510 = vpack.c.b16 %v502, %v501
      %519 = vmatpush.bf16.msra.mxu0 %v510
      %520 = vmatpush.bf16.msra.mxu0 %v509
      %521 = vmatpush.bf16.msra.mxu0 %v508
      %522 = vmatpush.bf16.msra.mxu0 %v507
      %523 = vmatpush.bf16.msra.mxu0 %v506
      %524 = vmatpush.bf16.msra.mxu0 %v505
      %525 = vmatpush.bf16.msra.mxu0 %v504
      %526 = vmatpush.bf16.msra.mxu0 %v503
      %527 = vmatmul.bf16.gmra.mxu0 %v454
      %v528 = vpop.f32.mrf.mxu0
      %v529 = vadd.f32 0.0, %v528
      %v530 = vpop.f32.mrf.mxu0
      %v531 = vadd.f32 0.0, %v530
      %532 = vdwg.mxu0
      %v533 = vld [vmem:[%s312] sm:$0xff]
      %v534 = vld [vmem:[%s312 + $0x8] sm:$0xff]
      %v535 = vmul.f32 %v533, 0.25
      %v536 = vmul.f32 %v534, 0.25
      %538 = vset.pattern.permute.xlu0 0
      %539 = vperm.xlu0 %538, %v535
      %v540 = vpop.permute.xlu0 %539
      %543 = vset.pattern.permute.xlu0 0
      %544 = vperm.xlu0 %543, %v536
      %v545 = vpop.permute.xlu0 %544
      %v547 = vmul.f32 %v529, %v540
      %v548 = vmul.f32 %v531, %v545
      %v549 = vld [vmem:[%s4] sm:$0x1]
      %v551 = vperm.slane %v549, 0
      %v553 = vadd.f32 %v547, %v551
      %v554 = vadd.f32 %v548, %v551
      %v555 = vld [vmem:[%s318] sm:$0xff]
      %v556 = vld [vmem:[%s318 + $0x8] sm:$0xff]
      %v557 = vadd.f32 %v553, %v555
      %v558 = vadd.f32 %v554, %v556
      %v559 = vld [vmem:[%s5] sm:$0x1]
      %v561 = vperm.slane %v559, 0
      %v563 = vmul.f32 %v557, %v561
      %v564 = vmul.f32 %v558, %v561
      %v565 = vld [vmem:[%s6] sm:$0x1]
      %v567 = vperm.slane %v565, 0
      %v569 = vadd.f32 %v563, %v567
      %v570 = vadd.f32 %v564, %v567
      %v571 = vmax.f32 %v569, 0.0
      %v572 = vmax.f32 %v570, 0.0
      %573 = vst.msk [vmem:[%s324] sm:$0xff] %vm330, %v571
      %574 = vst.msk [vmem:[%s324 + $0x8] sm:$0xff] %vm330, %v572
      %s575 = smul.u32 2, %s18
      %p576 = scmp.lt.s32.totalorder %s575, 3
      %s577 = scalar_select %p576, %s575, 3
      %s578 = smul.addr %s577, 8
      %s579 = scalar_lea.vmem %s7, %s578
      // Predicated region
      $region49: #{gat_seq_forward.7} parent=47 // pred_check
        %p580 = pneg %p198
      $region50: #{gat_seq_forward.7} parent=47 // pred_check_branch
        %582 = sbr.rel (%p580) target = $region52
      $region51: #{gat_seq_forward.7} parent=47 // pred_region
        %s583 = smul.u32 2, %s18
      $region52: #{gat_seq_forward.7} parent=47 // pred_fallthru
        _
    $region48: #{gat_seq_forward.7} parent=5 // pred_fallthru
      _
    %p584 = scmp.le.s32.totalorder 2, %s13
    // Predicated region
    $region53: #{gat_seq_forward.7} parent=5 // pred_check
      %p585 = pneg %p584
    $region54: #{gat_seq_forward.7} parent=5 // pred_check_branch
      %587 = sbr.rel (%p585) target = $region56
    $region55: #{gat_seq_forward.7} parent=5 // pred_region
      %s588 = ssub.s32 %s13, 2
      // Predicated region
      $region57: #{gat_seq_forward.7} parent=55 // pred_check
        %p589 = pneg %p204
      $region58: #{gat_seq_forward.7} parent=55 // pred_check_branch
        %591 = sbr.rel (%p589) target = $region60
      $region59: #{gat_seq_forward.7} parent=55 // pred_region
        %s592 = smul.u32 2, %s19
        %p593 = scmp.lt.s32.totalorder %s592, 3
        %s594 = scalar_select %p593, %s592, 3
        %s595 = smul.addr %s594, 8
        %s596 = scalar_lea.vmem %s7, %s595
      $region60: #{gat_seq_forward.7} parent=55 // pred_fallthru
        _
    $region56: #{gat_seq_forward.7} parent=5 // pred_fallthru
      _
  $region6: #{gat_seq_forward.7} parent=0 // loop_footer
    %s17 = sadd.s32 1, %s13
  $region7: #{gat_seq_forward.7} parent=0 // loop_footer_branch
    %12 = sbr.rel target = $region3
  $region8: #{gat_seq_forward.7} parent=0 // loop_exit
    _

// kernel: gat_seq_forward.11
$region0: #{gat_seq_forward.11}
  #allocation0 [shape = 'u32[]', space=smem, size = 0x4, offset = 0x4, fixed_abs, tag = 'smem constant byte address 0x4 - core index']
  #allocation1 [shape = 'u32[72,128]{1,0:T(1,128)}', space=vmem, size = 0x9000, scoped, tag = 'internal scratch']
  %s0 = inlined_call_operand.vmem [shape: bf16[32,128], index: 0, kind: input, shape index: {}]
  %s1 = inlined_call_operand.vmem [shape: bf16[128,32], index: 1, kind: input, shape index: {}]
  %s2 = inlined_call_operand.vmem [shape: f32[32,1], index: 2, kind: input, shape index: {}]
  %s3 = inlined_call_operand.vmem [shape: f32[32,32], index: 3, kind: input, shape index: {}]
  %s4 = inlined_call_operand.vmem [shape: f32[1,32], index: 4, kind: input, shape index: {}]
  %s5 = inlined_call_operand.vmem [shape: f32[1,32], index: 5, kind: input, shape index: {}]
  %s6 = inlined_call_operand.vmem [shape: f32[1,32], index: 6, kind: input, shape index: {}]
  %s7 = inlined_call_operand.hbm [shape: f32[32,32], index: 7, kind: output, shape index: {}]
  %s8 = sld [smem:[#allocation0]]
  $region61: #{gat_seq_forward.11} parent=0
    _
  %s10 = ssub.s32 1, %s8
  %s11 = scalar_select 0, %s10, %s8
  $region1: #{gat_seq_forward.11} parent=0
    #allocation2 [shape = 'u8[16384]{0}', space=vmem, size = 0x4000, scoped, tag = 'output window, operand 0']
    #allocation3 [shape = 's32[2]{0}', space=sflag, size = 0x8, scoped, tag = 'scoped memory for gat_seq_forward.11']
    %12 = vsyncpa [#allocation3], 0
    %s13 = scalar_lea.sflag [#allocation3], 1
    %14 = vsyncpa %s13, 0
    loop: start=0, step=1, limit=4
    $region2: #{gat_seq_forward.11} parent=1 // loop_pre_header
      _
    $region3: #{gat_seq_forward.11} parent=1 // loop_header
      %s16 = sphi 0, %s20
      %p17 = scmp.ge.s32.totalorder %s16, 4
      %s26 = sphi 0, %s28
      %s29 = sphi 0, %s26
      %s30 = sphi 0, %s29
      %s46 = sphi 0, %s30
      %s50 = sphi 0, %s50
      %s52 = sphi 0, %s50
      %s53 = sphi 0, %s52
      %s67 = sphi 0, %s53
      %s73 = sphi 0, %s75
      %s76 = sphi 0, %s73
      %s77 = sphi 0, %s76
      %s93 = sphi 0, %s77
      %s99 = sphi 0, %s101
      %s102 = sphi 0, %s99
      %s103 = sphi 0, %s102
      %s119 = sphi 0, %s103
      %s123 = sphi 0, %s123
      %s125 = sphi 0, %s123
      %s126 = sphi 0, %s125
      %s140 = sphi 0, %s126
      %s144 = sphi 0, %s144
      %s146 = sphi 0, %s144
      %s147 = sphi 0, %s146
      %s161 = sphi 0, %s147
      %s165 = sphi 0, %s165
      %s167 = sphi 0, %s165
      %s168 = sphi 0, %s167
      %s182 = sphi 0, %s168
      %s188 = sphi 0, %s190
      %s191 = sphi 0, %s188
      %s192 = sphi 0, %s191
      %s208 = sphi 0, %s192
    $region4: #{gat_seq_forward.11} parent=1 // loop_header_branch
      %19 = sbr.rel (%p17) target = $region8
    $region5: #{gat_seq_forward.11} parent=1 // loop_body
      %s21 = ssub.s32 %s16, 1
      %s22 = ssub.s32 %s16, 2
      %s23 = sadd.s32 %s16, 1
      %s24 = ssub.s32 %s16, %s23
      %p25 = scmp.eq.s32.totalorder %s24, 0
      %s27 = sadd.s32 %s26, 1
      %s28 = scalar_select %p25, %s26, %s27
      %p31 = pneg %p25
      %p32 = scmp.eq.s32.totalorder %s16, 1
      %p33 = por %p31, %p32
      %p34 = scmp.ne.s32.totalorder %s26, %s29
      %p35 = scmp.eq.s32.totalorder %s16, 0
      %p36 = por %p34, %p35
      %p37 = scmp.ne.s32.totalorder %s26, %s29
      %p38 = scmp.eq.s32.totalorder %s21, 1
      %p39 = por %p37, %p38
      %p40 = scmp.ne.s32.totalorder %s29, %s30
      %p41 = scmp.eq.s32.totalorder %s21, 0
      %p42 = por %p40, %p41
      %p43 = scmp.ne.s32.totalorder %s29, %s30
      %p44 = scmp.eq.s32.totalorder %s22, 1
      %p45 = por %p43, %p44
      %p47 = scmp.ne.s32.totalorder %s30, %s46
      %p48 = scmp.eq.s32.totalorder %s22, 0
      %p49 = por %p47, %p48
      %s51 = sadd.s32 %s50, 1
      %p54 = scmp.eq.s32.totalorder %s16, 1
      %p55 = scmp.ne.s32.totalorder %s50, %s52
      %p56 = scmp.eq.s32.totalorder %s16, 0
      %p57 = por %p55, %p56
      %p58 = scmp.ne.s32.totalorder %s50, %s52
      %p59 = scmp.eq.s32.totalorder %s21, 1
      %p60 = por %p58, %p59
      %p61 = scmp.ne.s32.totalorder %s52, %s53
      %p62 = scmp.eq.s32.totalorder %s21, 0
      %p63 = por %p61, %p62
      %p64 = scmp.ne.s32.totalorder %s52, %s53
      %p65 = scmp.eq.s32.totalorder %s22, 1
      %p66 = por %p64, %p65
      %p68 = scmp.ne.s32.totalorder %s53, %s67
      %p69 = scmp.eq.s32.totalorder %s22, 0
      %p70 = por %p68, %p69
      %s71 = ssub.s32 %s16, %s23
      %p72 = scmp.eq.s32.totalorder %s71, 0
      %s74 = sadd.s32 %s73, 1
      %s75 = scalar_select %p72, %s73, %s74
      %p78 = pneg %p72
      %p79 = scmp.eq.s32.totalorder %s16, 1
      %p80 = por %p78, %p79
      %p81 = scmp.ne.s32.totalorder %s73, %s76
      %p82 = scmp.eq.s32.totalorder %s16, 0
      %p83 = por %p81, %p82
      %p84 = scmp.ne.s32.totalorder %s73, %s76
      %p85 = scmp.eq.s32.totalorder %s21, 1
      %p86 = por %p84, %p85
      %p87 = scmp.ne.s32.totalorder %s76, %s77
      %p88 = scmp.eq.s32.totalorder %s21, 0
      %p89 = por %p87, %p88
      %p90 = scmp.ne.s32.totalorder %s76, %s77
      %p91 = scmp.eq.s32.totalorder %s22, 1
      %p92 = por %p90, %p91
      %p94 = scmp.ne.s32.totalorder %s77, %s93
      %p95 = scmp.eq.s32.totalorder %s22, 0
      %p96 = por %p94, %p95
      %s97 = ssub.s32 %s16, %s23
      %p98 = scmp.eq.s32.totalorder %s97, 0
      %s100 = sadd.s32 %s99, 1
      %s101 = scalar_select %p98, %s99, %s100
      %p104 = pneg %p98
      %p105 = scmp.eq.s32.totalorder %s16, 1
      %p106 = por %p104, %p105
      %p107 = scmp.ne.s32.totalorder %s99, %s102
      %p108 = scmp.eq.s32.totalorder %s16, 0
      %p109 = por %p107, %p108
      %p110 = scmp.ne.s32.totalorder %s99, %s102
      %p111 = scmp.eq.s32.totalorder %s21, 1
      %p112 = por %p110, %p111
      %p113 = scmp.ne.s32.totalorder %s102, %s103
      %p114 = scmp.eq.s32.totalorder %s21, 0
      %p115 = por %p113, %p114
      %p116 = scmp.ne.s32.totalorder %s102, %s103
      %p117 = scmp.eq.s32.totalorder %s22, 1
      %p118 = por %p116, %p117
      %p120 = scmp.ne.s32.totalorder %s103, %s119
      %p121 = scmp.eq.s32.totalorder %s22, 0
      %p122 = por %p120, %p121
      %s124 = sadd.s32 %s123, 1
      %p127 = scmp.eq.s32.totalorder %s16, 1
      %p128 = scmp.ne.s32.totalorder %s123, %s125
      %p129 = scmp.eq.s32.totalorder %s16, 0
      %p130 = por %p128, %p129
      %p131 = scmp.ne.s32.totalorder %s123, %s125
      %p132 = scmp.eq.s32.totalorder %s21, 1
      %p133 = por %p131, %p132
      %p134 = scmp.ne.s32.totalorder %s125, %s126
      %p135 = scmp.eq.s32.totalorder %s21, 0
      %p136 = por %p134, %p135
      %p137 = scmp.ne.s32.totalorder %s125, %s126
      %p138 = scmp.eq.s32.totalorder %s22, 1
      %p139 = por %p137, %p138
      %p141 = scmp.ne.s32.totalorder %s126, %s140
      %p142 = scmp.eq.s32.totalorder %s22, 0
      %p143 = por %p141, %p142
      %s145 = sadd.s32 %s144, 1
      %p148 = scmp.eq.s32.totalorder %s16, 1
      %p149 = scmp.ne.s32.totalorder %s144, %s146
      %p150 = scmp.eq.s32.totalorder %s16, 0
      %p151 = por %p149, %p150
      %p152 = scmp.ne.s32.totalorder %s144, %s146
      %p153 = scmp.eq.s32.totalorder %s21, 1
      %p154 = por %p152, %p153
      %p155 = scmp.ne.s32.totalorder %s146, %s147
      %p156 = scmp.eq.s32.totalorder %s21, 0
      %p157 = por %p155, %p156
      %p158 = scmp.ne.s32.totalorder %s146, %s147
      %p159 = scmp.eq.s32.totalorder %s22, 1
      %p160 = por %p158, %p159
      %p162 = scmp.ne.s32.totalorder %s147, %s161
      %p163 = scmp.eq.s32.totalorder %s22, 0
      %p164 = por %p162, %p163
      %s166 = sadd.s32 %s165, 1
      %p169 = scmp.eq.s32.totalorder %s16, 1
      %p170 = scmp.ne.s32.totalorder %s165, %s167
      %p171 = scmp.eq.s32.totalorder %s16, 0
      %p172 = por %p170, %p171
      %p173 = scmp.ne.s32.totalorder %s165, %s167
      %p174 = scmp.eq.s32.totalorder %s21, 1
      %p175 = por %p173, %p174
      %p176 = scmp.ne.s32.totalorder %s167, %s168
      %p177 = scmp.eq.s32.totalorder %s21, 0
      %p178 = por %p176, %p177
      %p179 = scmp.ne.s32.totalorder %s167, %s168
      %p180 = scmp.eq.s32.totalorder %s22, 1
      %p181 = por %p179, %p180
      %p183 = scmp.ne.s32.totalorder %s168, %s182
      %p184 = scmp.eq.s32.totalorder %s22, 0
      %p185 = por %p183, %p184
      %s186 = ssub.s32 %s16, %s23
      %p187 = scmp.eq.s32.totalorder %s186, 0
      %s189 = sadd.s32 %s188, 1
      %s190 = scalar_select %p187, %s188, %s189
      %p193 = pneg %p187
      %p194 = scmp.eq.s32.totalorder %s16, 1
      %p195 = por %p193, %p194
      %p196 = scmp.ne.s32.totalorder %s188, %s191
      %p197 = scmp.eq.s32.totalorder %s16, 0
      %p198 = por %p196, %p197
      %p199 = scmp.ne.s32.totalorder %s188, %s191
      %p200 = scmp.eq.s32.totalorder %s21, 1
      %p201 = por %p199, %p200
      %p202 = scmp.ne.s32.totalorder %s191, %s192
      %p203 = scmp.eq.s32.totalorder %s21, 0
      %p204 = por %p202, %p203
      %p205 = scmp.ne.s32.totalorder %s191, %s192
      %p206 = scmp.eq.s32.totalorder %s22, 1
      %p207 = por %p205, %p206
      %p209 = scmp.ne.s32.totalorder %s192, %s208
      %p210 = scmp.eq.s32.totalorder %s22, 0
      %p211 = por %p209, %p210
      %p212 = scmp.le.s32.totalorder 1, %s16
      %p213 = scmp.lt.s32.totalorder %s16, 3
      %p214 = pnand %p212, %p213
      %p215 = pneg %p214
      // Predicated region
      $region9: #{gat_seq_forward.11} parent=5 // pred_check
        _
      $region10: #{gat_seq_forward.11} parent=5 // pred_check_branch
        %217 = sbr.rel (%p214) target = $region12
      $region11: #{gat_seq_forward.11} parent=5 // pred_region
        %s218 = ssub.s32 %s16, 1
        // Predicated region
        $region13: #{gat_seq_forward.11} parent=11 // pred_check
          %p219 = pneg %p63
        $region14: #{gat_seq_forward.11} parent=11 // pred_check_branch
          %221 = sbr.rel (%p219) target = $region16
        $region15: #{gat_seq_forward.11} parent=11 // pred_region
          _
        $region16: #{gat_seq_forward.11} parent=11 // pred_fallthru
          _
        // Predicated region
        $region17: #{gat_seq_forward.11} parent=11 // pred_check
          %p222 = pneg %p136
        $region18: #{gat_seq_forward.11} parent=11 // pred_check_branch
          %224 = sbr.rel (%p222) target = $region20
        $region19: #{gat_seq_forward.11} parent=11 // pred_region
          _
        $region20: #{gat_seq_forward.11} parent=11 // pred_fallthru
          _
        // Predicated region
        $region21: #{gat_seq_forward.11} parent=11 // pred_check
          %p225 = pneg %p157
        $region22: #{gat_seq_forward.11} parent=11 // pred_check_branch
          %227 = sbr.rel (%p225) target = $region24
        $region23: #{gat_seq_forward.11} parent=11 // pred_region
          _
        $region24: #{gat_seq_forward.11} parent=11 // pred_fallthru
          _
        // Predicated region
        $region25: #{gat_seq_forward.11} parent=11 // pred_check
          %p228 = pneg %p178
        $region26: #{gat_seq_forward.11} parent=11 // pred_check_branch
          %230 = sbr.rel (%p228) target = $region28
        $region27: #{gat_seq_forward.11} parent=11 // pred_region
          _
        $region28: #{gat_seq_forward.11} parent=11 // pred_fallthru
          _
      $region12: #{gat_seq_forward.11} parent=5 // pred_fallthru
        _
      %p231 = scmp.lt.s32.totalorder %s16, 2
      // Predicated region
      $region29: #{gat_seq_forward.11} parent=5 // pred_check
        %p232 = pneg %p231
      $region30: #{gat_seq_forward.11} parent=5 // pred_check_branch
        %234 = sbr.rel (%p232) target = $region32
      $region31: #{gat_seq_forward.11} parent=5 // pred_region
        // Predicated region
        $region33: #{gat_seq_forward.11} parent=31 // pred_check
          %p235 = pneg %p36
        $region34: #{gat_seq_forward.11} parent=31 // pred_check_branch
          %237 = sbr.rel (%p235) target = $region36
        $region35: #{gat_seq_forward.11} parent=31 // pred_region
          %s238 = smul.u32 2, %s16
          %p239 = scmp.lt.s32.totalorder %s238, 3
          %s240 = scalar_select %p239, %s238, 3
          %s241 = smul.addr %s240, 4
          %s242 = scalar_lea.vmem %s0, %s241
          %s243 = smul.u32 2, %s16
        $region36: #{gat_seq_forward.11} parent=31 // pred_fallthru
          _
        // Predicated region
        $region37: #{gat_seq_forward.11} parent=31 // pred_check
          %p244 = pneg %p83
        $region38: #{gat_seq_forward.11} parent=31 // pred_check_branch
          %246 = sbr.rel (%p244) target = $region40
        $region39: #{gat_seq_forward.11} parent=31 // pred_region
          %s247 = smul.u32 2, %s16
          %p248 = scmp.lt.s32.totalorder %s247, 3
          %s249 = scalar_select %p248, %s247, 3
          %s250 = smul.addr %s249, 8
          %s251 = scalar_lea.vmem %s2, %s250
          %s252 = smul.u32 2, %s16
        $region40: #{gat_seq_forward.11} parent=31 // pred_fallthru
          _
        // Predicated region
        $region41: #{gat_seq_forward.11} parent=31 // pred_check
          %p253 = pneg %p109
        $region42: #{gat_seq_forward.11} parent=31 // pred_check_branch
          %255 = sbr.rel (%p253) target = $region44
        $region43: #{gat_seq_forward.11} parent=31 // pred_region
          %s256 = smul.u32 2, %s16
          %p257 = scmp.lt.s32.totalorder %s256, 3
          %s258 = scalar_select %p257, %s256, 3
          %s259 = smul.addr %s258, 8
          %s260 = scalar_lea.vmem %s3, %s259
          %s261 = smul.u32 2, %s16
        $region44: #{gat_seq_forward.11} parent=31 // pred_fallthru
          _
      $region32: #{gat_seq_forward.11} parent=5 // pred_fallthru
        _
      %p262 = scmp.le.s32.totalorder 1, %s16
      %p263 = scmp.lt.s32.totalorder %s16, 3
      %p264 = pnand %p262, %p263
      %p265 = pneg %p264
      // Predicated region
      $region45: #{gat_seq_forward.11} parent=5 // pred_check
        _
      $region46: #{gat_seq_forward.11} parent=5 // pred_check_branch
        %267 = sbr.rel (%p264) target = $region48
      $region47: #{gat_seq_forward.11} parent=5 // pred_region
        %s268 = ssub.s32 %s16, 1
        %s269 = smul.u32 2, %s21
        %p270 = scmp.lt.s32.totalorder %s269, 3
        %s271 = scalar_select %p270, %s269, 3
        %s272 = smul.addr %s271, 4
        %s273 = scalar_lea.vmem %s0, %s272
        %p274 = pneg %p42
        %p275 = pneg %p39
        %p276 = pneg %p63
        %p277 = pneg %p60
        %s278 = smul.u32 2, %s21
        %p279 = scmp.lt.s32.totalorder %s278, 3
        %s280 = scalar_select %p279, %s278, 3
        %s281 = smul.addr %s280, 8
        %s282 = scalar_lea.vmem %s2, %s281
        %p283 = pneg %p89
        %p284 = pneg %p86
        %s285 = smul.u32 2, %s21
        %p286 = scmp.lt.s32.totalorder %s285, 3
        %s287 = scalar_select %p286, %s285, 3
        %s288 = smul.addr %s287, 8
        %s289 = scalar_lea.vmem %s3, %s288
        %p290 = pneg %p115
        %p291 = pneg %p112
        %p292 = pneg %p136
        %p293 = pneg %p133
        %p294 = pneg %p157
        %p295 = pneg %p154
        %p296 = pneg %p178
        %p297 = pneg %p175
        %p298 = pneg %p204
        %p299 = pneg %p201
        %s300 = sand.u32 %s191, 1
        %s301 = scalar_lea.sflag [#allocation3], %s300
        %s302 = sand.u32 %s191, 1
        %s303 = smul.addr %s302, 16
        %s304 = scalar_lea.vmem [#allocation2], %s303
        %s305 = smul.u32 2, %s21
        %p306 = scmp.lt.s32.totalorder %s305, 3
        %s307 = scalar_select %p306, %s305, 3
        %s308 = smul.addr %s307, 4
        %s309 = scalar_lea.vmem %s0, %s308
        %s310 = smul.u32 2, %s21
        %s311 = smul.u32 2, %s21
        %p312 = scmp.lt.s32.totalorder %s311, 3
        %s313 = scalar_select %p312, %s311, 3
        %s314 = smul.addr %s313, 8
        %s315 = scalar_lea.vmem %s2, %s314
        %s316 = smul.u32 2, %s21
        %s317 = smul.u32 2, %s21
        %p318 = scmp.lt.s32.totalorder %s317, 3
        %s319 = scalar_select %p318, %s317, 3
        %s320 = smul.addr %s319, 8
        %s321 = scalar_lea.vmem %s3, %s320
        %s322 = smul.u32 2, %s21
        %s323 = smul.u32 2, %s21
        %v324 = vld [vmem:[%s309] sm:$0xf]
        %v325 = vld [vmem:[%s309 + $0x4] sm:$0xf]
        %v326 = vunpack.c.l.bf16 %v324
        %v327 = vunpack.c.l.bf16 %v325
        %vm328 = vcmask 261120
        %v329 = vsel %vm328, %v326, -inf
        %330 = vmax.xlane.f32.xlu0 %v329
        %v331 = vpop.xlane.xlu0 %330
        %v332 = vsel %vm328, %v327, -inf
        %333 = vmax.xlane.f32.xlu0 %v332
        %v334 = vpop.xlane.xlu0 %333
        %v335 = vsub.f32 %v326, %v331
        %v336 = vsub.f32 %v327, %v334
        %v337 = vmul.f32 %v335, 1.442695
        %v338 = vpow.pop %v337
        %v339 = vmul.f32 %v336, 1.442695
        %v340 = vpow.pop %v339
        %v341 = vsel %vm328, %v338, 0.0
        %342 = vadd.xlane.f32.xlu0 %v341
        %v343 = vpop.xlane.xlu0 %342
        %v344 = vsel %vm328, %v340, 0.0
        %345 = vadd.xlane.f32.xlu0 %v344
        %v346 = vpop.xlane.xlu0 %345
        %v347 = vrcp.pop %v343
        %v348 = vrcp.pop %v346
        %v349 = vmul.f32 %v338, %v347
        %v350 = vmul.f32 %v340, %v348
        %vm351 = vcmask 523520
        %v352 = vsel %vm351, %v326, -inf
        %353 = vmax.xlane.f32.xlu0 %v352
        %v354 = vpop.xlane.xlu0 %353
        %v355 = vsel %vm351, %v327, -inf
        %356 = vmax.xlane.f32.xlu0 %v355
        %v357 = vpop.xlane.xlu0 %356
        %v358 = vsub.f32 %v326, %v354
        %v359 = vsub.f32 %v327, %v357
        %v360 = vmul.f32 %v358, 1.442695
        %v361 = vpow.pop %v360
        %v362 = vmul.f32 %v359, 1.442695
        %v363 = vpow.pop %v362
        %366 = vrot.lane.b32.xlu0 %v361, 96
        %v367 = vpop.permute.xlu0 %366
        %368 = vrot.lane.b32.xlu0 %v363, 96
        %v369 = vpop.permute.xlu0 %368
        %v372 = vsel %vm328, %v367, 0.0
        %373 = vadd.xlane.f32.xlu0 %v372
        %v374 = vpop.xlane.xlu0 %373
        %v375 = vsel %vm328, %v369, 0.0
        %376 = vadd.xlane.f32.xlu0 %v375
        %v377 = vpop.xlane.xlu0 %376
        %v378 = vrcp.pop %v374
        %v379 = vrcp.pop %v377
        %v380 = vmul.f32 %v361, %v378
        %v381 = vmul.f32 %v363, %v379
        %vm382 = vcmask 785920
        %v383 = vsel %vm382, %v326, -inf
        %384 = vmax.xlane.f32.xlu0 %v383
        %v385 = vpop.xlane.xlu0 %384
        %v386 = vsel %vm382, %v327, -inf
        %387 = vmax.xlane.f32.xlu0 %v386
        %v388 = vpop.xlane.xlu0 %387
        %v389 = vsub.f32 %v326, %v385
        %v390 = vsub.f32 %v327, %v388
        %v391 = vmul.f32 %v389, 1.442695
        %v392 = vpow.pop %v391
        %v393 = vmul.f32 %v390, 1.442695
        %v394 = vpow.pop %v393
        %397 = vrot.lane.b32.xlu0 %v392, 64
        %v398 = vpop.permute.xlu0 %397
        %399 = vrot.lane.b32.xlu0 %v394, 64
        %v400 = vpop.permute.xlu0 %399
        %v403 = vsel %vm328, %v398, 0.0
        %404 = vadd.xlane.f32.xlu0 %v403
        %v405 = vpop.xlane.xlu0 %404
        %v406 = vsel %vm328, %v400, 0.0
        %407 = vadd.xlane.f32.xlu0 %v406
        %v408 = vpop.xlane.xlu0 %407
        %v409 = vrcp.pop %v405
        %v410 = vrcp.pop %v408
        %v411 = vmul.f32 %v392, %v409
        %v412 = vmul.f32 %v394, %v410
        %vm413 = vcmask 1048320
        %v414 = vsel %vm413, %v326, -inf
        %415 = vmax.xlane.f32.xlu0 %v414
        %v416 = vpop.xlane.xlu0 %415
        %v417 = vsel %vm413, %v327, -inf
        %418 = vmax.xlane.f32.xlu0 %v417
        %v419 = vpop.xlane.xlu0 %418
        %v420 = vsub.f32 %v326, %v416
        %v421 = vsub.f32 %v327, %v419
        %v422 = vmul.f32 %v420, 1.442695
        %v423 = vpow.pop %v422
        %v424 = vmul.f32 %v421, 1.442695
        %v425 = vpow.pop %v424
        %428 = vrot.lane.b32.xlu0 %v423, 32
        %v429 = vpop.permute.xlu0 %428
        %430 = vrot.lane.b32.xlu0 %v425, 32
        %v431 = vpop.permute.xlu0 %430
        %v434 = vsel %vm328, %v429, 0.0
        %435 = vadd.xlane.f32.xlu0 %v434
        %v436 = vpop.xlane.xlu0 %435
        %v437 = vsel %vm328, %v431, 0.0
        %438 = vadd.xlane.f32.xlu0 %v437
        %v439 = vpop.xlane.xlu0 %438
        %v440 = vrcp.pop %v436
        %v441 = vrcp.pop %v439
        %v442 = vmul.f32 %v423, %v440
        %v443 = vmul.f32 %v425, %v441
        %v444 = vsel %vm328, %v349, %v380
        %v445 = vsel %vm328, %v350, %v381
        %vm446 = vcmask 523264
        %v447 = vsel %vm446, %v444, %v411
        %v448 = vsel %vm446, %v445, %v412
        %vm449 = vcmask 785408
        %v450 = vsel %vm449, %v447, %v442
        %v451 = vsel %vm449, %v448, %v443
        %v452 = vpack.c.bf16 %v451, %v450
        %v453 = vld [vmem:[%s1] sm:$0xf]
        %v454 = vld [vmem:[%s1 + $0x4] sm:$0xf]
        %v455 = vld [vmem:[%s1 + $0x8] sm:$0xf]
        %v456 = vld [vmem:[%s1 + $0xc] sm:$0xf]
        %v457 = vld [vmem:[%s1 + $0x10] sm:$0xf]
        %v458 = vld [vmem:[%s1 + $0x14] sm:$0xf]
        %v459 = vld [vmem:[%s1 + $0x18] sm:$0xf]
        %v460 = vld [vmem:[%s1 + $0x1c] sm:$0xf]
        %v461 = vld [vmem:[%s1 + $0x20] sm:$0xf]
        %v462 = vld [vmem:[%s1 + $0x24] sm:$0xf]
        %v463 = vld [vmem:[%s1 + $0x28] sm:$0xf]
        %v464 = vld [vmem:[%s1 + $0x2c] sm:$0xf]
        %v465 = vld [vmem:[%s1 + $0x30] sm:$0xf]
        %v466 = vld [vmem:[%s1 + $0x34] sm:$0xf]
        %v467 = vld [vmem:[%s1 + $0x38] sm:$0xf]
        %v468 = vld [vmem:[%s1 + $0x3c] sm:$0xf]
        %v485 = vunpack.c.l.b16 %v453
        %v486 = vunpack.c.l.b16 %v454
        %v487 = vunpack.c.l.b16 %v455
        %v488 = vunpack.c.l.b16 %v456
        %v489 = vunpack.c.l.b16 %v457
        %v490 = vunpack.c.l.b16 %v458
        %v491 = vunpack.c.l.b16 %v459
        %v492 = vunpack.c.l.b16 %v460
        %v493 = vunpack.c.l.b16 %v461
        %v494 = vunpack.c.l.b16 %v462
        %v495 = vunpack.c.l.b16 %v463
        %v496 = vunpack.c.l.b16 %v464
        %v497 = vunpack.c.l.b16 %v465
        %v498 = vunpack.c.l.b16 %v466
        %v499 = vunpack.c.l.b16 %v467
        %v500 = vunpack.c.l.b16 %v468
        %v501 = vpack.c.b16 %v486, %v485
        %v502 = vpack.c.b16 %v488, %v487
        %v503 = vpack.c.b16 %v490, %v489
        %v504 = vpack.c.b16 %v492, %v491
        %v505 = vpack.c.b16 %v494, %v493
        %v506 = vpack.c.b16 %v496, %v495
        %v507 = vpack.c.b16 %v498, %v497
        %v508 = vpack.c.b16 %v500, %v499
        %517 = vmatpush.bf16.msra.mxu0 %v508
        %518 = vmatpush.bf16.msra.mxu0 %v507
        %519 = vmatpush.bf16.msra.mxu0 %v506
        %520 = vmatpush.bf16.msra.mxu0 %v505
        %521 = vmatpush.bf16.msra.mxu0 %v504
        %522 = vmatpush.bf16.msra.mxu0 %v503
        %523 = vmatpush.bf16.msra.mxu0 %v502
        %524 = vmatpush.bf16.msra.mxu0 %v501
        %525 = vmatmul.bf16.gmra.mxu0 %v452
        %v526 = vpop.f32.mrf.mxu0
        %v527 = vadd.f32 0.0, %v526
        %v528 = vpop.f32.mrf.mxu0
        %v529 = vadd.f32 0.0, %v528
        %530 = vdwg.mxu0
        %v531 = vld [vmem:[%s315] sm:$0xff]
        %v532 = vld [vmem:[%s315 + $0x8] sm:$0xff]
        %v533 = vmul.f32 %v531, 0.25
        %v534 = vmul.f32 %v532, 0.25
        %536 = vset.pattern.permute.xlu0 0
        %537 = vperm.xlu0 %536, %v533
        %v538 = vpop.permute.xlu0 %537
        %541 = vset.pattern.permute.xlu0 0
        %542 = vperm.xlu0 %541, %v534
        %v543 = vpop.permute.xlu0 %542
        %v545 = vmul.f32 %v527, %v538
        %v546 = vmul.f32 %v529, %v543
        %v547 = vld [vmem:[%s4] sm:$0x1]
        %v549 = vperm.slane %v547, 0
        %v551 = vadd.f32 %v545, %v549
        %v552 = vadd.f32 %v546, %v549
        %v553 = vld [vmem:[%s321] sm:$0xff]
        %v554 = vld [vmem:[%s321 + $0x8] sm:$0xff]
        %v555 = vadd.f32 %v551, %v553
        %v556 = vadd.f32 %v552, %v554
        %557 = vst.msk [vmem:[%s304] sm:$0xff] %vm328, %v555
        %558 = vst.msk [vmem:[%s304 + $0x8] sm:$0xff] %vm328, %v556
        %s559 = sand.u32 %s191, 1
        %s560 = scalar_lea.sflag [#allocation3], %s559
        %s561 = sand.u32 %s191, 1
        %s562 = smul.addr %s561, 16
        %s563 = scalar_lea.vmem [#allocation2], %s562
        // Predicated region
        $region49: #{gat_seq_forward.11} parent=47 // pred_check
          %p564 = pneg %p201
        $region50: #{gat_seq_forward.11} parent=47 // pred_check_branch
          %566 = sbr.rel (%p564) target = $region52
        $region51: #{gat_seq_forward.11} parent=47 // pred_region
          %s567 = smul.u32 2, %s21
          %569 = vsyncadd %s560, 0
          %s570 = smul.addr %s567, 8
          %s571 = scalar_lea.hbm %s7, %s570
          %s572 = sshll.u32 %s563, 4
          %s573 = int_to_ptr.vmem [resolvable:$true] %s572
          %s574 = sshll.u32 %s571, 4
          %s575 = int_to_ptr.hbm [resolvable:$true] %s574
          %580 = dma.vmem_to_hbm [thread:$0]  %s573, 256, %s575, %s560, 128, 128, 8
        $region52: #{gat_seq_forward.11} parent=47 // pred_fallthru
          _
      $region48: #{gat_seq_forward.11} parent=5 // pred_fallthru
        _
      %p581 = scmp.le.s32.totalorder 2, %s16
      // Predicated region
      $region53: #{gat_seq_forward.11} parent=5 // pred_check
        %p582 = pneg %p581
      $region54: #{gat_seq_forward.11} parent=5 // pred_check_branch
        %584 = sbr.rel (%p582) target = $region56
      $region55: #{gat_seq_forward.11} parent=5 // pred_region
        %s585 = ssub.s32 %s16, 2
        // Predicated region
        $region57: #{gat_seq_forward.11} parent=55 // pred_check
          %p586 = pneg %p207
        $region58: #{gat_seq_forward.11} parent=55 // pred_check_branch
          %588 = sbr.rel (%p586) target = $region60
        $region59: #{gat_seq_forward.11} parent=55 // pred_region
          %s589 = sand.u32 %s192, 1
          %s590 = scalar_lea.sflag [#allocation3], %s589
          %s591 = sand.u32 %s192, 1
          %s592 = smul.addr %s591, 16
          %s593 = scalar_lea.vmem [#allocation2], %s592
          %595 = dma.done %s590, 256
        $region60: #{gat_seq_forward.11} parent=55 // pred_fallthru
          _
      $region56: #{gat_seq_forward.11} parent=5 // pred_fallthru
        _
    $region6: #{gat_seq_forward.11} parent=1 // loop_footer
      %s20 = sadd.s32 1, %s16
    $region7: #{gat_seq_forward.11} parent=1 // loop_footer_branch
      %15 = sbr.rel target = $region3
    $region8: #{gat_seq_forward.11} parent=1 // loop_exit
      _
    %596 = vsyncpa [#allocation3], 1
    %s597 = scalar_lea.sflag [#allocation3], 1
    %598 = vsyncpa %s597, 1

</llo_original>
